<compile_context>
chip_gen: v7x
topology: tpu7x:2x2x1
jax: 0.10.0
libtpu: 0.0.40
codegen_flags: <defaults>
</compile_context>

<pallas_src>
import functools
import math

import jax
import jax.numpy as jnp
import numpy as np
from jax import lax
from jax.experimental import pallas as pl
from jax.experimental.pallas import tpu as pltpu

# ----------------------------- model dimensions -----------------------------
D_MODEL = 16
D_STATE = 16
D_CONV = 4
EXPAND = 2
D_INNER = EXPAND * D_MODEL                   # 32
DT_RANK = math.ceil(D_MODEL / 16)            # 1  ('auto')

BATCH = 2
SEQLEN = 8


# ----------------------------- small math helpers ----------------------------
def _sigmoid(x):
    # overflow-free logistic (exp argument is always <= 0)
    e = jnp.exp(-jnp.abs(x))
    return jnp.where(x >= 0, 1.0 / (1.0 + e), e / (1.0 + e))


def _softplus(x):
    # numerically stable softplus using only exp/log (Mosaic-friendly)
    return jnp.maximum(x, 0.0) + jnp.log(1.0 + jnp.exp(-jnp.abs(x)))


# --------------------- packed weight-slab row layout (shared) -----------------
def _slab_rows(n_batch, d_model, d_inner, d_state, d_conv):
    """Row offsets of every piece inside the single (rows, 2*B*d_inner) slab."""
    Bdm, Bdi = n_batch * d_model, n_batch * d_inner
    r = {}
    r["wxz"] = 0                                   # (Bdm, 2*Bdi)   [in_proj x | z]
    r["wdd"] = r["wxz"] + Bdm                      # (Bdi, Bdi)     folded dt projection
    r["wbc"] = r["wdd"] + Bdi                      # (B*2*ds, Bdi)  [W_B^T ; W_C^T] block-diag
    r["wo"] = r["wbc"] + n_batch * 2 * d_state     # (Bdi, 2*Bdi)   out_proj (zero-padded lanes)
    r["a"] = r["wo"] + Bdi                         # (ds, Bdi)      -exp(A_log)^T lane-tiled
    r["cw"] = r["a"] + d_state                     # (K, Bdi)       depthwise conv taps
    r["cb"] = r["cw"] + d_conv                     # (1, Bdi)       conv bias
    r["bdt"] = r["cb"] + 1                         # (1, Bdi)       2 * dt_proj.bias
    r["d"] = r["bdt"] + 1                          # (1, Bdi)       D skip
    r["total"] = r["d"] + 1
    return r


# ------------------------------- fused kernel --------------------------------
def _mamba_fused_kernel(hs_ref, slab_ref, o_ref, *, d_inner, d_state, d_conv):
    """Whole Mamba forward; batch packed on the lane axis, weights in one slab.

    hs_ref   : (B, L, d_model)        raw hidden states
    slab_ref : (rows, 2*B*d_inner)    packed weight slab (see _slab_rows)
    o_ref    : (L, 2*B*d_inner)       lane-dense output; cols [0, B*d_model) valid
    """
    f32 = jnp.float32
    n_batch, L, d_model = hs_ref.shape
    K, ds = d_conv, d_state
    Bdm = n_batch * d_model
    Bdi = n_batch * d_inner
    r = _slab_rows(n_batch, d_model, d_inner, d_state, d_conv)

    # ---- lane-pack the input: hs_p[l, b*dm + m] = hidden_states[b, l, m] ----
    hs_p = jnp.concatenate([hs_ref[b] for b in range(n_batch)], axis=1)   # (L, Bdm)

    # ---- fused in_proj: x and z halves in ONE 128-lane MXU launch ----
    xz = jnp.dot(hs_p, slab_ref[r["wxz"]:r["wxz"] + Bdm, :],
                 preferred_element_type=f32)                              # (L, 2*Bdi)
    x_p = xz[:, :Bdi]
    z_p = xz[:, Bdi:2 * Bdi]

    # ---- causal depthwise conv1d (padding=K-1, truncated to L) + SiLU ----
    cw = slab_ref[r["cw"]:r["cw"] + K, 0:Bdi]                             # (K, Bdi)
    cb = slab_ref[r["cb"]:r["cb"] + 1, 0:Bdi]                             # (1, Bdi)
    row = lax.broadcasted_iota(jnp.int32, (L, Bdi), 0)
    acc = jnp.broadcast_to(cb, (L, Bdi))
    for k in range(K):                                                    # static K taps
        s = K - 1 - k                                                     # causal shift
        shifted = x_p if s == 0 else jnp.where(
            row >= s, pltpu.roll(x_p, shift=s, axis=0), 0.0)
        acc = acc + cw[k:k + 1, :] * shifted
    u_p = acc * _sigmoid(acc)                                             # SiLU, (L, Bdi)

    # ---- dt projection (dt_rank folded into one matmul) + double bias + softplus ----
    bdt = slab_ref[r["bdt"]:r["bdt"] + 1, 0:Bdi]
    delta_p = _softplus(
        jnp.dot(u_p, slab_ref[r["wdd"]:r["wdd"] + Bdi, 0:Bdi],
                preferred_element_type=f32) + bdt)                        # (L, Bdi)

    # ---- B/C projections directly in (B*2*ds, L) orientation (no transposes) ----
    wbc = slab_ref[r["wbc"]:r["wbc"] + n_batch * 2 * ds, 0:Bdi]
    bc_t = lax.dot_general(wbc, u_p, (((1,), (1,)), ((), ())),
                           preferred_element_type=f32)                    # (B*2*ds, L)

    a_p = slab_ref[r["a"]:r["a"] + ds, 0:Bdi]                             # (ds, Bdi)
    dvec = slab_ref[r["d"]:r["d"] + 1, 0:Bdi]                             # (1, Bdi)
    du_p = delta_p * u_p                                                  # (L, Bdi)

    # ---- per-step tensors that do NOT depend on the state: built before the
    #      recurrence so the EUP exp / XLU broadcast work is off the serial chain ----
    def cast(off, l):
        # lane-broadcast column l of bc_t rows [b*2ds+off, +ds) across each batch block
        return jnp.concatenate(
            [jnp.broadcast_to(
                bc_t[b * 2 * ds + off:b * 2 * ds + off + ds, l:l + 1],
                (ds, d_inner)) for b in range(n_batch)], axis=1)          # (ds, Bdi)

    dA = [jnp.exp(delta_p[l:l + 1, :] * a_p) for l in range(L)]           # (ds, Bdi) each
    dBu = [du_p[l:l + 1, :] * cast(0, l) for l in range(L)]               # (ds, Bdi) each
    c_cast = [cast(ds, l) for l in range(L)]                              # (ds, Bdi) each

    # ---- selective scan: serial chain is just L fused multiply-adds; the
    #      C-reduction does not feed the recurrence and the y rows are
    #      collected and concatenated once (no per-step select-accumulate) ----
    state = jnp.zeros((ds, Bdi), f32)
    ys = []
    for l in range(L):                                                    # static, L = 8
        state = dA[l] * state + dBu[l]
        ys.append(jnp.sum(state * c_cast[l], axis=0, keepdims=True))      # (1, Bdi)
    y_p = jnp.concatenate(ys, axis=0)                                     # (L, Bdi)

    # ---- skip (u*D), SiLU(z) gate, out_proj; single lane-dense 128-wide store ----
    y_p = (y_p + u_p * dvec) * (z_p * _sigmoid(z_p))
    o_ref[...] = jnp.dot(y_p, slab_ref[r["wo"]:r["wo"] + Bdi, :],
                         preferred_element_type=f32)


# --------------------------- one-time weight packing ---------------------------
def prepare_params(p, n_batch):
    """Pack all weights into one lane-dense f32 slab (done ONCE, outside the
    per-call path).  Returns (slab, dims)."""
    f32 = jnp.float32
    d_model = p["W_in"].shape[0]
    d_inner = p["W_in"].shape[1] // 2
    d_state = p["A_log"].shape[1]
    dt_rank = p["W_dt"].shape[0]
    d_conv = p["conv_w"].shape[0]
    Bdi = n_batch * d_inner
    W = 2 * Bdi                                            # slab lane width (128 here)
    r = _slab_rows(n_batch, d_model, d_inner, d_state, d_conv)

    eye = jnp.eye(n_batch, dtype=f32)
    blk = lambda w: jnp.kron(eye, jnp.asarray(w, f32))     # block-diag over batch
    tile_l = lambda v: jnp.tile(jnp.asarray(v, f32).reshape(1, -1), (1, n_batch))
    pad_w = lambda m: jnp.pad(m, ((0, 0), (0, W - m.shape[1])))

    W_in = jnp.asarray(p["W_in"], f32)
    W_xp = jnp.asarray(p["W_xproj"], f32)

    pieces = [
        # fused in_proj: [x-half | z-half], already full 2*Bdi lanes wide
        jnp.concatenate([blk(W_in[:, :d_inner]), blk(W_in[:, d_inner:])], axis=1),
        # folded dt projection: (u @ W_dt_in) @ W_dt == u @ (W_dt_in @ W_dt)
        pad_w(blk(W_xp[:, :dt_rank] @ jnp.asarray(p["W_dt"], f32))),
        # [W_B^T ; W_C^T] block-diag for the transposed-RHS dot_general
        pad_w(blk(jnp.concatenate([W_xp[:, dt_rank:dt_rank + d_state].T,
                                   W_xp[:, dt_rank + d_state:].T], axis=0))),
        # out_proj, zero-padded to 128 lanes -> lane-dense output store
        pad_w(blk(p["W_out"])),
        # A^T = (-exp(A_log))^T, lane-tiled over batch
        pad_w(jnp.tile((-jnp.exp(jnp.asarray(p["A_log"], f32))).T, (1, n_batch))),
        # depthwise conv taps / bias
        pad_w(jnp.tile(jnp.asarray(p["conv_w"], f32), (1, n_batch))),
        pad_w(tile_l(p["conv_b"])),
        # NOTE: reference semantics: dt_proj adds its bias AND _selective_scan_py
        # adds delta_bias (== dt_proj.bias) a second time -> fold as 2*b_dt.
        pad_w(tile_l(2.0 * jnp.asarray(p["b_dt"], f32))),
        pad_w(tile_l(p["D"])),
    ]
    slab = jnp.concatenate(pieces, axis=0)
    assert slab.shape == (r["total"], W), (slab.shape, r["total"], W)
    slab = jnp.pad(slab, ((0, (-r["total"]) % 8), (0, 0)))  # sublane-align rows
    dims = dict(n_batch=n_batch, d_model=d_model, d_inner=d_inner,
                d_state=d_state, d_conv=d_conv)
    return slab, dims


# ------------------------------- forward builder -------------------------------
def make_mamba_forward(dims):
    kernel = functools.partial(_mamba_fused_kernel,
                               d_inner=dims["d_inner"],
                               d_state=dims["d_state"],
                               d_conv=dims["d_conv"])

    @jax.jit
    def fwd(hidden_states, slab):
        B, L, dm = hidden_states.shape
        Wl = slab.shape[1]
        out_p = pl.pallas_call(
            kernel,
            out_shape=jax.ShapeDtypeStruct((L, Wl), jnp.float32),
        )(hidden_states.astype(jnp.float32), slab)
        # unpack lane-dense (L, 128) output -> (B, L, d_model); layout plumbing only
        return jnp.transpose(out_p[:, :B * dm].reshape(L, B, dm), (1, 0, 2))

    return fwd


# --------------------------- pure-JAX reference -------------------------------
def mamba_reference(hidden_states, p):
    Bsz, L, dm = hidden_states.shape
    d_inner = p["W_in"].shape[1] // 2
    d_state = p["A_log"].shape[1]
    dt_rank = p["W_dt"].shape[0]
    x32 = hidden_states.astype(jnp.float32)
    xz = jnp.dot(x32, p["W_in"])
    x, z = jnp.split(xz, 2, axis=-1)                     # (B, L, d_inner)
    K = p["conv_w"].shape[0]
    xc = jnp.transpose(x, (0, 2, 1))                     # (B, d_inner, L)
    xpad = jnp.pad(xc, ((0, 0), (0, 0), (K - 1, 0)))
    conv = jnp.zeros_like(xc)
    for k in range(K):
        conv = conv + p["conv_w"][k][None, :, None] * xpad[:, :, k:k + L]
    conv = conv + p["conv_b"][None, :, None]
    xact = conv * _sigmoid(conv)
    x_t = jnp.transpose(xact, (0, 2, 1))                 # (B, L, d_inner)
    x_dbl = jnp.dot(x_t, p["W_xproj"])
    dt_low = x_dbl[..., :dt_rank]
    Bp = x_dbl[..., dt_rank:dt_rank + d_state]
    Cp = x_dbl[..., dt_rank + d_state:]
    delta = _softplus(jnp.dot(dt_low, p["W_dt"]) + 2.0 * p["b_dt"])
    A = -jnp.exp(p["A_log"])
    u = x_t

    def step(state, inp):
        d_i, u_i, b_i, c_i = inp
        dA = jnp.exp(d_i[:, :, None] * A[None, :, :])
        dBu = (d_i * u_i)[:, :, None] * b_i[:, None, :]
        state = dA * state + dBu
        y = jnp.sum(state * c_i[:, None, :], axis=-1)
        return state, y

    init = jnp.zeros((Bsz, d_inner, d_state), jnp.float32)
    _, ys = lax.scan(step, init,
                     (jnp.transpose(delta, (1, 0, 2)),
                      jnp.transpose(u, (1, 0, 2)),
                      jnp.transpose(Bp, (1, 0, 2)),
                      jnp.transpose(Cp, (1, 0, 2))))
    y = jnp.transpose(ys, (1, 0, 2))
    y = y + u * p["D"][None, None, :]
    y = y * (z * _sigmoid(z))
    return jnp.dot(y, p["W_out"])


# ------------------------------- parameter init -------------------------------
def init_params(key):
    ks = jax.random.split(key, 7)

    def uni(k, shape, bound):
        return jax.random.uniform(k, shape, jnp.float32, -bound, bound)

    p = {}
    p["W_in"] = uni(ks[0], (D_MODEL, 2 * D_INNER), 1.0 / math.sqrt(D_MODEL))
    # torch conv1d.weight is (d_inner, 1, K); here stored as (K, d_inner)
    p["conv_w"] = uni(ks[1], (D_CONV, D_INNER), 1.0 / math.sqrt(D_CONV))
    p["conv_b"] = uni(ks[2], (D_INNER,), 1.0 / math.sqrt(D_CONV))
    p["W_xproj"] = uni(ks[3], (D_INNER, DT_RANK + 2 * D_STATE), 1.0 / math.sqrt(D_INNER))
    p["W_dt"] = uni(ks[4], (DT_RANK, D_INNER), DT_RANK ** -0.5)
    dt = jnp.exp(jax.random.uniform(ks[5], (D_INNER,), jnp.float32)
                 * (math.log(0.1) - math.log(0.001)) + math.log(0.001))
    dt = jnp.clip(dt, 1e-4)
    p["b_dt"] = dt + jnp.log(-jnp.expm1(-dt))            # inverse-softplus init
    p["A_log"] = jnp.log(jnp.broadcast_to(
        jnp.arange(1, D_STATE + 1, dtype=jnp.float32), (D_INNER, D_STATE)))
    p["D"] = jnp.ones((D_INNER,), jnp.float32)
    p["W_out"] = uni(ks[6], (D_INNER, D_MODEL), 1.0 / math.sqrt(D_INNER))
    return p
    # TODO(synk): bimamba_type='v2' creates A_b_log/conv1d_b/x_proj_b/dt_proj_b/
    # D_b/in_proj_extra, but forward() never uses them, so they are omitted.


# ------------------------------------ main ------------------------------------
if __name__ == "__main__":
    key = jax.random.PRNGKey(0)
    pkey, xkey = jax.random.split(key)
    params = init_params(pkey)
    hidden_states = jax.random.normal(xkey, (BATCH, SEQLEN, D_MODEL), jnp.float32)

    # one-time packing (hoisted out of the steady-state per-call path)
    slab, dims = prepare_params(params, BATCH)
    slab = jax.block_until_ready(slab)

    mamba_forward = make_mamba_forward(dims)
    out = mamba_forward(hidden_states, slab)
    out = jax.block_until_ready(out)
    assert out.shape == (BATCH, SEQLEN, D_MODEL)

    ref = mamba_reference(hidden_states, params)
    np.testing.assert_allclose(np.asarray(out), np.asarray(ref), rtol=2e-2, atol=2e-2)

    print("KERNEL_OK")
</pallas_src>

<mosaic_0001>
module attributes {stable_mosaic.version = 11 : i64} {
  func.func @_mamba_fused_kernel(%arg0: memref<2x8x16xf32, #tpu.memory_space<vmem>>, %arg1: memref<248x128xf32, #tpu.memory_space<vmem>>, %arg2: memref<8x128xf32, #tpu.memory_space<vmem>>) attributes {dimension_semantics = [], scalar_prefetch = 0 : i64, scratch_operands = 0 : i64, tpu.core_type = #tpu.core_type<tc>} {
    %c0 = arith.constant 0 : index
    %c0_0 = arith.constant 0 : index
    %c0_1 = arith.constant 0 : index
    %0 = vector.load %arg0[%c0, %c0_0, %c0_1] : memref<2x8x16xf32, #tpu.memory_space<vmem>>, vector<1x8x16xf32>
    %1 = vector.shape_cast %0 : vector<1x8x16xf32> to vector<8x16xf32>
    %c1 = arith.constant 1 : index
    %c0_2 = arith.constant 0 : index
    %c0_3 = arith.constant 0 : index
    %2 = vector.load %arg0[%c1, %c0_2, %c0_3] : memref<2x8x16xf32, #tpu.memory_space<vmem>>, vector<1x8x16xf32>
    %3 = vector.shape_cast %2 : vector<1x8x16xf32> to vector<8x16xf32>
    %4 = tpu.concatenate %1, %3 in 1 : vector<8x16xf32>, vector<8x16xf32> -> vector<8x32xf32>
    %c0_4 = arith.constant 0 : index
    %c0_5 = arith.constant 0 : index
    %5 = vector.load %arg1[%c0_4, %c0_5] : memref<248x128xf32, #tpu.memory_space<vmem>>, vector<32x128xf32>
    %cst = arith.constant dense<0.000000e+00> : vector<8x128xf32>
    %6 = tpu.matmul %4, %5, %cst {dimension_numbers = #tpu.dot_dimension_numbers<[1], [0], [0], [1], [0, 0, 1, 1], [], []>} : vector<8x32xf32>, vector<32x128xf32>, vector<8x128xf32> -> vector<8x128xf32>
    %7 = vector.extract_strided_slice %6 {offsets = [0, 0], sizes = [8, 64], strides = [1, 1]} : vector<8x128xf32> to vector<8x64xf32>
    %8 = vector.extract_strided_slice %6 {offsets = [0, 64], sizes = [8, 64], strides = [1, 1]} : vector<8x128xf32> to vector<8x64xf32>
    %c240 = arith.constant 240 : index
    %c0_6 = arith.constant 0 : index
    %9 = vector.load %arg1[%c240, %c0_6] : memref<248x128xf32, #tpu.memory_space<vmem>>, vector<4x64xf32>
    %c244 = arith.constant 244 : index
    %c0_7 = arith.constant 0 : index
    %10 = vector.load %arg1[%c244, %c0_7] : memref<248x128xf32, #tpu.memory_space<vmem>>, vector<1x64xf32>
    %11 = tpu.iota {dimensions = array<i32: 0>} : vector<8x64xi32>
    %12 = vector.shape_cast %10 : vector<1x64xf32> to vector<1x64xf32>
    %13 = vector.broadcast %12 : vector<1x64xf32> to vector<8x64xf32>
    %c3_i32 = arith.constant 3 : i32
    %14 = vector.broadcast %c3_i32 : i32 to vector<8x64xi32>
    %15 = arith.cmpi sge, %11, %14 : vector<8x64xi32>
    %c3_i32_8 = arith.constant 3 : i32
    %16 = tpu.dynamic_rotate %7 by %c3_i32_8 dim 0 : vector<8x64xf32>, i32 -> vector<8x64xf32>
    %cst_9 = arith.constant 0.000000e+00 : f32
    %17 = vector.broadcast %cst_9 : f32 to vector<8x64xf32>
    %18 = arith.select %15, %16, %17 : vector<8x64xi1>, vector<8x64xf32>
    %19 = vector.extract_strided_slice %9 {offsets = [0, 0], sizes = [1, 64], strides = [1, 1]} : vector<4x64xf32> to vector<1x64xf32>
    %20 = vector.broadcast %19 : vector<1x64xf32> to vector<8x64xf32>
    %21 = arith.mulf %20, %18 : vector<8x64xf32>
    %22 = arith.addf %13, %21 : vector<8x64xf32>
    %c2_i32 = arith.constant 2 : i32
    %23 = vector.broadcast %c2_i32 : i32 to vector<8x64xi32>
    %24 = arith.cmpi sge, %11, %23 : vector<8x64xi32>
    %c2_i32_10 = arith.constant 2 : i32
    %25 = tpu.dynamic_rotate %7 by %c2_i32_10 dim 0 : vector<8x64xf32>, i32 -> vector<8x64xf32>
    %cst_11 = arith.constant 0.000000e+00 : f32
    %26 = vector.broadcast %cst_11 : f32 to vector<8x64xf32>
    %27 = arith.select %24, %25, %26 : vector<8x64xi1>, vector<8x64xf32>
    %28 = vector.extract_strided_slice %9 {offsets = [1, 0], sizes = [1, 64], strides = [1, 1]} : vector<4x64xf32> to vector<1x64xf32>
    %29 = vector.broadcast %28 : vector<1x64xf32> to vector<8x64xf32>
    %30 = arith.mulf %29, %27 : vector<8x64xf32>
    %31 = arith.addf %22, %30 : vector<8x64xf32>
    %c1_i32 = arith.constant 1 : i32
    %32 = vector.broadcast %c1_i32 : i32 to vector<8x64xi32>
    %33 = arith.cmpi sge, %11, %32 : vector<8x64xi32>
    %c1_i32_12 = arith.constant 1 : i32
    %34 = tpu.dynamic_rotate %7 by %c1_i32_12 dim 0 : vector<8x64xf32>, i32 -> vector<8x64xf32>
    %cst_13 = arith.constant 0.000000e+00 : f32
    %35 = vector.broadcast %cst_13 : f32 to vector<8x64xf32>
    %36 = arith.select %33, %34, %35 : vector<8x64xi1>, vector<8x64xf32>
    %37 = vector.extract_strided_slice %9 {offsets = [2, 0], sizes = [1, 64], strides = [1, 1]} : vector<4x64xf32> to vector<1x64xf32>
    %38 = vector.broadcast %37 : vector<1x64xf32> to vector<8x64xf32>
    %39 = arith.mulf %38, %36 : vector<8x64xf32>
    %40 = arith.addf %31, %39 : vector<8x64xf32>
    %41 = vector.extract_strided_slice %9 {offsets = [3, 0], sizes = [1, 64], strides = [1, 1]} : vector<4x64xf32> to vector<1x64xf32>
    %42 = vector.broadcast %41 : vector<1x64xf32> to vector<8x64xf32>
    %43 = arith.mulf %42, %7 : vector<8x64xf32>
    %44 = arith.addf %40, %43 : vector<8x64xf32>
    %45 = math.absf %44 : vector<8x64xf32>
    %cst_14 = arith.constant 0.000000e+00 : f32
    %46 = vector.broadcast %cst_14 : f32 to vector<8x64xf32>
    %47 = arith.subf %46, %45 : vector<8x64xf32>
    %48 = math.exp %47 : vector<8x64xf32>
    %cst_15 = arith.constant 0.000000e+00 : f32
    %49 = vector.broadcast %cst_15 : f32 to vector<8x64xf32>
    %50 = arith.cmpf oge, %44, %49 : vector<8x64xf32>
    %cst_16 = arith.constant 1.000000e+00 : f32
    %51 = vector.broadcast %cst_16 : f32 to vector<8x64xf32>
    %52 = arith.addf %51, %48 : vector<8x64xf32>
    %cst_17 = arith.constant 1.000000e+00 : f32
    %53 = vector.broadcast %cst_17 : f32 to vector<8x64xf32>
    %54 = arith.divf %53, %52 : vector<8x64xf32>
    %cst_18 = arith.constant 1.000000e+00 : f32
    %55 = vector.broadcast %cst_18 : f32 to vector<8x64xf32>
    %56 = arith.addf %55, %48 : vector<8x64xf32>
    %57 = arith.divf %48, %56 : vector<8x64xf32>
    %58 = arith.select %50, %54, %57 : vector<8x64xi1>, vector<8x64xf32>
    %59 = arith.mulf %44, %58 : vector<8x64xf32>
    %c245 = arith.constant 245 : index
    %c0_19 = arith.constant 0 : index
    %60 = vector.load %arg1[%c245, %c0_19] : memref<248x128xf32, #tpu.memory_space<vmem>>, vector<1x64xf32>
    %c32 = arith.constant 32 : index
    %c0_20 = arith.constant 0 : index
    %61 = vector.load %arg1[%c32, %c0_20] : memref<248x128xf32, #tpu.memory_space<vmem>>, vector<64x64xf32>
    %cst_21 = arith.constant dense<0.000000e+00> : vector<8x64xf32>
    %62 = tpu.matmul %59, %61, %cst_21 {dimension_numbers = #tpu.dot_dimension_numbers<[1], [0], [0], [1], [0, 0, 1, 1], [], []>} : vector<8x64xf32>, vector<64x64xf32>, vector<8x64xf32> -> vector<8x64xf32>
    %63 = vector.broadcast %60 : vector<1x64xf32> to vector<8x64xf32>
    %64 = arith.addf %62, %63 : vector<8x64xf32>
    %cst_22 = arith.constant 0.000000e+00 : f32
    %65 = vector.broadcast %cst_22 : f32 to vector<8x64xf32>
    %66 = arith.maximumf %64, %65 : vector<8x64xf32>
    %67 = math.absf %64 : vector<8x64xf32>
    %cst_23 = arith.constant 0.000000e+00 : f32
    %68 = vector.broadcast %cst_23 : f32 to vector<8x64xf32>
    %69 = arith.subf %68, %67 : vector<8x64xf32>
    %70 = math.exp %69 : vector<8x64xf32>
    %cst_24 = arith.constant 1.000000e+00 : f32
    %71 = vector.broadcast %cst_24 : f32 to vector<8x64xf32>
    %72 = arith.addf %71, %70 : vector<8x64xf32>
    %73 = math.log %72 : vector<8x64xf32>
    %74 = arith.addf %66, %73 : vector<8x64xf32>
    %c96 = arith.constant 96 : index
    %c0_25 = arith.constant 0 : index
    %75 = vector.load %arg1[%c96, %c0_25] : memref<248x128xf32, #tpu.memory_space<vmem>>, vector<64x64xf32>
    %cst_26 = arith.constant dense<0.000000e+00> : vector<64x8xf32>
    %76 = tpu.matmul %75, %59, %cst_26 {dimension_numbers = #tpu.dot_dimension_numbers<[1], [1], [0], [0], [0, 0, 1, 0], [], []>} : vector<64x64xf32>, vector<8x64xf32>, vector<64x8xf32> -> vector<64x8xf32>
    %c224 = arith.constant 224 : index
    %c0_27 = arith.constant 0 : index
    %77 = vector.load %arg1[%c224, %c0_27] : memref<248x128xf32, #tpu.memory_space<vmem>>, vector<16x64xf32>
    %c246 = arith.constant 246 : index
    %c0_28 = arith.constant 0 : index
    %78 = vector.load %arg1[%c246, %c0_28] : memref<248x128xf32, #tpu.memory_space<vmem>>, vector<1x64xf32>
    %79 = arith.mulf %74, %59 : vector<8x64xf32>
    %80 = vector.extract_strided_slice %74 {offsets = [0, 0], sizes = [1, 64], strides = [1, 1]} : vector<8x64xf32> to vector<1x64xf32>
    %81 = vector.broadcast %80 : vector<1x64xf32> to vector<16x64xf32>
    %82 = arith.mulf %81, %77 : vector<16x64xf32>
    %83 = math.exp %82 : vector<16x64xf32>
    %84 = vector.extract_strided_slice %74 {offsets = [1, 0], sizes = [1, 64], strides = [1, 1]} : vector<8x64xf32> to vector<1x64xf32>
    %85 = vector.broadcast %84 : vector<1x64xf32> to vector<16x64xf32>
    %86 = arith.mulf %85, %77 : vector<16x64xf32>
    %87 = math.exp %86 : vector<16x64xf32>
    %88 = vector.extract_strided_slice %74 {offsets = [2, 0], sizes = [1, 64], strides = [1, 1]} : vector<8x64xf32> to vector<1x64xf32>
    %89 = vector.broadcast %88 : vector<1x64xf32> to vector<16x64xf32>
    %90 = arith.mulf %89, %77 : vector<16x64xf32>
    %91 = math.exp %90 : vector<16x64xf32>
    %92 = vector.extract_strided_slice %74 {offsets = [3, 0], sizes = [1, 64], strides = [1, 1]} : vector<8x64xf32> to vector<1x64xf32>
    %93 = vector.broadcast %92 : vector<1x64xf32> to vector<16x64xf32>
    %94 = arith.mulf %93, %77 : vector<16x64xf32>
    %95 = math.exp %94 : vector<16x64xf32>
    %96 = vector.extract_strided_slice %74 {offsets = [4, 0], sizes = [1, 64], strides = [1, 1]} : vector<8x64xf32> to vector<1x64xf32>
    %97 = vector.broadcast %96 : vector<1x64xf32> to vector<16x64xf32>
    %98 = arith.mulf %97, %77 : vector<16x64xf32>
    %99 = math.exp %98 : vector<16x64xf32>
    %100 = vector.extract_strided_slice %74 {offsets = [5, 0], sizes = [1, 64], strides = [1, 1]} : vector<8x64xf32> to vector<1x64xf32>
    %101 = vector.broadcast %100 : vector<1x64xf32> to vector<16x64xf32>
    %102 = arith.mulf %101, %77 : vector<16x64xf32>
    %103 = math.exp %102 : vector<16x64xf32>
    %104 = vector.extract_strided_slice %74 {offsets = [6, 0], sizes = [1, 64], strides = [1, 1]} : vector<8x64xf32> to vector<1x64xf32>
    %105 = vector.broadcast %104 : vector<1x64xf32> to vector<16x64xf32>
    %106 = arith.mulf %105, %77 : vector<16x64xf32>
    %107 = math.exp %106 : vector<16x64xf32>
    %108 = vector.extract_strided_slice %74 {offsets = [7, 0], sizes = [1, 64], strides = [1, 1]} : vector<8x64xf32> to vector<1x64xf32>
    %109 = vector.broadcast %108 : vector<1x64xf32> to vector<16x64xf32>
    %110 = arith.mulf %109, %77 : vector<16x64xf32>
    %111 = math.exp %110 : vector<16x64xf32>
    %112 = vector.extract_strided_slice %79 {offsets = [0, 0], sizes = [1, 64], strides = [1, 1]} : vector<8x64xf32> to vector<1x64xf32>
    %113 = vector.extract_strided_slice %76 {offsets = [0, 0], sizes = [16, 1], strides = [1, 1]} : vector<64x8xf32> to vector<16x1xf32>
    %114 = vector.shape_cast %113 : vector<16x1xf32> to vector<16x1xf32>
    %115 = vector.broadcast %114 : vector<16x1xf32> to vector<16x32xf32>
    %116 = vector.extract_strided_slice %76 {offsets = [32, 0], sizes = [16, 1], strides = [1, 1]} : vector<64x8xf32> to vector<16x1xf32>
    %117 = vector.shape_cast %116 : vector<16x1xf32> to vector<16x1xf32>
    %118 = vector.broadcast %117 : vector<16x1xf32> to vector<16x32xf32>
    %119 = tpu.concatenate %115, %118 in 1 : vector<16x32xf32>, vector<16x32xf32> -> vector<16x64xf32>
    %120 = vector.broadcast %112 : vector<1x64xf32> to vector<16x64xf32>
    %121 = arith.mulf %120, %119 : vector<16x64xf32>
    %122 = vector.extract_strided_slice %79 {offsets = [1, 0], sizes = [1, 64], strides = [1, 1]} : vector<8x64xf32> to vector<1x64xf32>
    %123 = vector.extract_strided_slice %76 {offsets = [0, 1], sizes = [16, 1], strides = [1, 1]} : vector<64x8xf32> to vector<16x1xf32>
    %124 = vector.shape_cast %123 : vector<16x1xf32> to vector<16x1xf32>
    %125 = vector.broadcast %124 : vector<16x1xf32> to vector<16x32xf32>
    %126 = vector.extract_strided_slice %76 {offsets = [32, 1], sizes = [16, 1], strides = [1, 1]} : vector<64x8xf32> to vector<16x1xf32>
    %127 = vector.shape_cast %126 : vector<16x1xf32> to vector<16x1xf32>
    %128 = vector.broadcast %127 : vector<16x1xf32> to vector<16x32xf32>
    %129 = tpu.concatenate %125, %128 in 1 : vector<16x32xf32>, vector<16x32xf32> -> vector<16x64xf32>
    %130 = vector.broadcast %122 : vector<1x64xf32> to vector<16x64xf32>
    %131 = arith.mulf %130, %129 : vector<16x64xf32>
    %132 = vector.extract_strided_slice %79 {offsets = [2, 0], sizes = [1, 64], strides = [1, 1]} : vector<8x64xf32> to vector<1x64xf32>
    %133 = vector.extract_strided_slice %76 {offsets = [0, 2], sizes = [16, 1], strides = [1, 1]} : vector<64x8xf32> to vector<16x1xf32>
    %134 = vector.shape_cast %133 : vector<16x1xf32> to vector<16x1xf32>
    %135 = vector.broadcast %134 : vector<16x1xf32> to vector<16x32xf32>
    %136 = vector.extract_strided_slice %76 {offsets = [32, 2], sizes = [16, 1], strides = [1, 1]} : vector<64x8xf32> to vector<16x1xf32>
    %137 = vector.shape_cast %136 : vector<16x1xf32> to vector<16x1xf32>
    %138 = vector.broadcast %137 : vector<16x1xf32> to vector<16x32xf32>
    %139 = tpu.concatenate %135, %138 in 1 : vector<16x32xf32>, vector<16x32xf32> -> vector<16x64xf32>
    %140 = vector.broadcast %132 : vector<1x64xf32> to vector<16x64xf32>
    %141 = arith.mulf %140, %139 : vector<16x64xf32>
    %142 = vector.extract_strided_slice %79 {offsets = [3, 0], sizes = [1, 64], strides = [1, 1]} : vector<8x64xf32> to vector<1x64xf32>
    %143 = vector.extract_strided_slice %76 {offsets = [0, 3], sizes = [16, 1], strides = [1, 1]} : vector<64x8xf32> to vector<16x1xf32>
    %144 = vector.shape_cast %143 : vector<16x1xf32> to vector<16x1xf32>
    %145 = vector.broadcast %144 : vector<16x1xf32> to vector<16x32xf32>
    %146 = vector.extract_strided_slice %76 {offsets = [32, 3], sizes = [16, 1], strides = [1, 1]} : vector<64x8xf32> to vector<16x1xf32>
    %147 = vector.shape_cast %146 : vector<16x1xf32> to vector<16x1xf32>
    %148 = vector.broadcast %147 : vector<16x1xf32> to vector<16x32xf32>
    %149 = tpu.concatenate %145, %148 in 1 : vector<16x32xf32>, vector<16x32xf32> -> vector<16x64xf32>
    %150 = vector.broadcast %142 : vector<1x64xf32> to vector<16x64xf32>
    %151 = arith.mulf %150, %149 : vector<16x64xf32>
    %152 = vector.extract_strided_slice %79 {offsets = [4, 0], sizes = [1, 64], strides = [1, 1]} : vector<8x64xf32> to vector<1x64xf32>
    %153 = vector.extract_strided_slice %76 {offsets = [0, 4], sizes = [16, 1], strides = [1, 1]} : vector<64x8xf32> to vector<16x1xf32>
    %154 = vector.shape_cast %153 : vector<16x1xf32> to vector<16x1xf32>
    %155 = vector.broadcast %154 : vector<16x1xf32> to vector<16x32xf32>
    %156 = vector.extract_strided_slice %76 {offsets = [32, 4], sizes = [16, 1], strides = [1, 1]} : vector<64x8xf32> to vector<16x1xf32>
    %157 = vector.shape_cast %156 : vector<16x1xf32> to vector<16x1xf32>
    %158 = vector.broadcast %157 : vector<16x1xf32> to vector<16x32xf32>
    %159 = tpu.concatenate %155, %158 in 1 : vector<16x32xf32>, vector<16x32xf32> -> vector<16x64xf32>
    %160 = vector.broadcast %152 : vector<1x64xf32> to vector<16x64xf32>
    %161 = arith.mulf %160, %159 : vector<16x64xf32>
    %162 = vector.extract_strided_slice %79 {offsets = [5, 0], sizes = [1, 64], strides = [1, 1]} : vector<8x64xf32> to vector<1x64xf32>
    %163 = vector.extract_strided_slice %76 {offsets = [0, 5], sizes = [16, 1], strides = [1, 1]} : vector<64x8xf32> to vector<16x1xf32>
    %164 = vector.shape_cast %163 : vector<16x1xf32> to vector<16x1xf32>
    %165 = vector.broadcast %164 : vector<16x1xf32> to vector<16x32xf32>
    %166 = vector.extract_strided_slice %76 {offsets = [32, 5], sizes = [16, 1], strides = [1, 1]} : vector<64x8xf32> to vector<16x1xf32>
    %167 = vector.shape_cast %166 : vector<16x1xf32> to vector<16x1xf32>
    %168 = vector.broadcast %167 : vector<16x1xf32> to vector<16x32xf32>
    %169 = tpu.concatenate %165, %168 in 1 : vector<16x32xf32>, vector<16x32xf32> -> vector<16x64xf32>
    %170 = vector.broadcast %162 : vector<1x64xf32> to vector<16x64xf32>
    %171 = arith.mulf %170, %169 : vector<16x64xf32>
    %172 = vector.extract_strided_slice %79 {offsets = [6, 0], sizes = [1, 64], strides = [1, 1]} : vector<8x64xf32> to vector<1x64xf32>
    %173 = vector.extract_strided_slice %76 {offsets = [0, 6], sizes = [16, 1], strides = [1, 1]} : vector<64x8xf32> to vector<16x1xf32>
    %174 = vector.shape_cast %173 : vector<16x1xf32> to vector<16x1xf32>
    %175 = vector.broadcast %174 : vector<16x1xf32> to vector<16x32xf32>
    %176 = vector.extract_strided_slice %76 {offsets = [32, 6], sizes = [16, 1], strides = [1, 1]} : vector<64x8xf32> to vector<16x1xf32>
    %177 = vector.shape_cast %176 : vector<16x1xf32> to vector<16x1xf32>
    %178 = vector.broadcast %177 : vector<16x1xf32> to vector<16x32xf32>
    %179 = tpu.concatenate %175, %178 in 1 : vector<16x32xf32>, vector<16x32xf32> -> vector<16x64xf32>
    %180 = vector.broadcast %172 : vector<1x64xf32> to vector<16x64xf32>
    %181 = arith.mulf %180, %179 : vector<16x64xf32>
    %182 = vector.extract_strided_slice %79 {offsets = [7, 0], sizes = [1, 64], strides = [1, 1]} : vector<8x64xf32> to vector<1x64xf32>
    %183 = vector.extract_strided_slice %76 {offsets = [0, 7], sizes = [16, 1], strides = [1, 1]} : vector<64x8xf32> to vector<16x1xf32>
    %184 = vector.shape_cast %183 : vector<16x1xf32> to vector<16x1xf32>
    %185 = vector.broadcast %184 : vector<16x1xf32> to vector<16x32xf32>
    %186 = vector.extract_strided_slice %76 {offsets = [32, 7], sizes = [16, 1], strides = [1, 1]} : vector<64x8xf32> to vector<16x1xf32>
    %187 = vector.shape_cast %186 : vector<16x1xf32> to vector<16x1xf32>
    %188 = vector.broadcast %187 : vector<16x1xf32> to vector<16x32xf32>
    %189 = tpu.concatenate %185, %188 in 1 : vector<16x32xf32>, vector<16x32xf32> -> vector<16x64xf32>
    %190 = vector.broadcast %182 : vector<1x64xf32> to vector<16x64xf32>
    %191 = arith.mulf %190, %189 : vector<16x64xf32>
    %192 = vector.extract_strided_slice %76 {offsets = [16, 0], sizes = [16, 1], strides = [1, 1]} : vector<64x8xf32> to vector<16x1xf32>
    %193 = vector.shape_cast %192 : vector<16x1xf32> to vector<16x1xf32>
    %194 = vector.broadcast %193 : vector<16x1xf32> to vector<16x32xf32>
    %195 = vector.extract_strided_slice %76 {offsets = [48, 0], sizes = [16, 1], strides = [1, 1]} : vector<64x8xf32> to vector<16x1xf32>
    %196 = vector.shape_cast %195 : vector<16x1xf32> to vector<16x1xf32>
    %197 = vector.broadcast %196 : vector<16x1xf32> to vector<16x32xf32>
    %198 = tpu.concatenate %194, %197 in 1 : vector<16x32xf32>, vector<16x32xf32> -> vector<16x64xf32>
    %199 = vector.extract_strided_slice %76 {offsets = [16, 1], sizes = [16, 1], strides = [1, 1]} : vector<64x8xf32> to vector<16x1xf32>
    %200 = vector.shape_cast %199 : vector<16x1xf32> to vector<16x1xf32>
    %201 = vector.broadcast %200 : vector<16x1xf32> to vector<16x32xf32>
    %202 = vector.extract_strided_slice %76 {offsets = [48, 1], sizes = [16, 1], strides = [1, 1]} : vector<64x8xf32> to vector<16x1xf32>
    %203 = vector.shape_cast %202 : vector<16x1xf32> to vector<16x1xf32>
    %204 = vector.broadcast %203 : vector<16x1xf32> to vector<16x32xf32>
    %205 = tpu.concatenate %201, %204 in 1 : vector<16x32xf32>, vector<16x32xf32> -> vector<16x64xf32>
    %206 = vector.extract_strided_slice %76 {offsets = [16, 2], sizes = [16, 1], strides = [1, 1]} : vector<64x8xf32> to vector<16x1xf32>
    %207 = vector.shape_cast %206 : vector<16x1xf32> to vector<16x1xf32>
    %208 = vector.broadcast %207 : vector<16x1xf32> to vector<16x32xf32>
    %209 = vector.extract_strided_slice %76 {offsets = [48, 2], sizes = [16, 1], strides = [1, 1]} : vector<64x8xf32> to vector<16x1xf32>
    %210 = vector.shape_cast %209 : vector<16x1xf32> to vector<16x1xf32>
    %211 = vector.broadcast %210 : vector<16x1xf32> to vector<16x32xf32>
    %212 = tpu.concatenate %208, %211 in 1 : vector<16x32xf32>, vector<16x32xf32> -> vector<16x64xf32>
    %213 = vector.extract_strided_slice %76 {offsets = [16, 3], sizes = [16, 1], strides = [1, 1]} : vector<64x8xf32> to vector<16x1xf32>
    %214 = vector.shape_cast %213 : vector<16x1xf32> to vector<16x1xf32>
    %215 = vector.broadcast %214 : vector<16x1xf32> to vector<16x32xf32>
    %216 = vector.extract_strided_slice %76 {offsets = [48, 3], sizes = [16, 1], strides = [1, 1]} : vector<64x8xf32> to vector<16x1xf32>
    %217 = vector.shape_cast %216 : vector<16x1xf32> to vector<16x1xf32>
    %218 = vector.broadcast %217 : vector<16x1xf32> to vector<16x32xf32>
    %219 = tpu.concatenate %215, %218 in 1 : vector<16x32xf32>, vector<16x32xf32> -> vector<16x64xf32>
    %220 = vector.extract_strided_slice %76 {offsets = [16, 4], sizes = [16, 1], strides = [1, 1]} : vector<64x8xf32> to vector<16x1xf32>
    %221 = vector.shape_cast %220 : vector<16x1xf32> to vector<16x1xf32>
    %222 = vector.broadcast %221 : vector<16x1xf32> to vector<16x32xf32>
    %223 = vector.extract_strided_slice %76 {offsets = [48, 4], sizes = [16, 1], strides = [1, 1]} : vector<64x8xf32> to vector<16x1xf32>
    %224 = vector.shape_cast %223 : vector<16x1xf32> to vector<16x1xf32>
    %225 = vector.broadcast %224 : vector<16x1xf32> to vector<16x32xf32>
    %226 = tpu.concatenate %222, %225 in 1 : vector<16x32xf32>, vector<16x32xf32> -> vector<16x64xf32>
    %227 = vector.extract_strided_slice %76 {offsets = [16, 5], sizes = [16, 1], strides = [1, 1]} : vector<64x8xf32> to vector<16x1xf32>
    %228 = vector.shape_cast %227 : vector<16x1xf32> to vector<16x1xf32>
    %229 = vector.broadcast %228 : vector<16x1xf32> to vector<16x32xf32>
    %230 = vector.extract_strided_slice %76 {offsets = [48, 5], sizes = [16, 1], strides = [1, 1]} : vector<64x8xf32> to vector<16x1xf32>
    %231 = vector.shape_cast %230 : vector<16x1xf32> to vector<16x1xf32>
    %232 = vector.broadcast %231 : vector<16x1xf32> to vector<16x32xf32>
    %233 = tpu.concatenate %229, %232 in 1 : vector<16x32xf32>, vector<16x32xf32> -> vector<16x64xf32>
    %234 = vector.extract_strided_slice %76 {offsets = [16, 6], sizes = [16, 1], strides = [1, 1]} : vector<64x8xf32> to vector<16x1xf32>
    %235 = vector.shape_cast %234 : vector<16x1xf32> to vector<16x1xf32>
    %236 = vector.broadcast %235 : vector<16x1xf32> to vector<16x32xf32>
    %237 = vector.extract_strided_slice %76 {offsets = [48, 6], sizes = [16, 1], strides = [1, 1]} : vector<64x8xf32> to vector<16x1xf32>
    %238 = vector.shape_cast %237 : vector<16x1xf32> to vector<16x1xf32>
    %239 = vector.broadcast %238 : vector<16x1xf32> to vector<16x32xf32>
    %240 = tpu.concatenate %236, %239 in 1 : vector<16x32xf32>, vector<16x32xf32> -> vector<16x64xf32>
    %241 = vector.extract_strided_slice %76 {offsets = [16, 7], sizes = [16, 1], strides = [1, 1]} : vector<64x8xf32> to vector<16x1xf32>
    %242 = vector.shape_cast %241 : vector<16x1xf32> to vector<16x1xf32>
    %243 = vector.broadcast %242 : vector<16x1xf32> to vector<16x32xf32>
    %244 = vector.extract_strided_slice %76 {offsets = [48, 7], sizes = [16, 1], strides = [1, 1]} : vector<64x8xf32> to vector<16x1xf32>
    %245 = vector.shape_cast %244 : vector<16x1xf32> to vector<16x1xf32>
    %246 = vector.broadcast %245 : vector<16x1xf32> to vector<16x32xf32>
    %247 = tpu.concatenate %243, %246 in 1 : vector<16x32xf32>, vector<16x32xf32> -> vector<16x64xf32>
    %cst_29 = arith.constant 0.000000e+00 : f32
    %248 = vector.broadcast %cst_29 : f32 to vector<16x64xf32>
    %249 = arith.mulf %83, %248 : vector<16x64xf32>
    %250 = arith.addf %249, %121 : vector<16x64xf32>
    %251 = arith.mulf %250, %198 : vector<16x64xf32>
    %cst_30 = arith.constant dense<0.000000e+00> : vector<64xf32>
    %252 = vector.multi_reduction <add>, %251, %cst_30 [0] : vector<16x64xf32> to vector<64xf32>
    %253 = vector.shape_cast %252 : vector<64xf32> to vector<1x64xf32>
    %254 = arith.mulf %87, %250 : vector<16x64xf32>
    %255 = arith.addf %254, %131 : vector<16x64xf32>
    %256 = arith.mulf %255, %205 : vector<16x64xf32>
    %cst_31 = arith.constant dense<0.000000e+00> : vector<64xf32>
    %257 = vector.multi_reduction <add>, %256, %cst_31 [0] : vector<16x64xf32> to vector<64xf32>
    %258 = vector.shape_cast %257 : vector<64xf32> to vector<1x64xf32>
    %259 = arith.mulf %91, %255 : vector<16x64xf32>
    %260 = arith.addf %259, %141 : vector<16x64xf32>
    %261 = arith.mulf %260, %212 : vector<16x64xf32>
    %cst_32 = arith.constant dense<0.000000e+00> : vector<64xf32>
    %262 = vector.multi_reduction <add>, %261, %cst_32 [0] : vector<16x64xf32> to vector<64xf32>
    %263 = vector.shape_cast %262 : vector<64xf32> to vector<1x64xf32>
    %264 = arith.mulf %95, %260 : vector<16x64xf32>
    %265 = arith.addf %264, %151 : vector<16x64xf32>
    %266 = arith.mulf %265, %219 : vector<16x64xf32>
    %cst_33 = arith.constant dense<0.000000e+00> : vector<64xf32>
    %267 = vector.multi_reduction <add>, %266, %cst_33 [0] : vector<16x64xf32> to vector<64xf32>
    %268 = vector.shape_cast %267 : vector<64xf32> to vector<1x64xf32>
    %269 = arith.mulf %99, %265 : vector<16x64xf32>
    %270 = arith.addf %269, %161 : vector<16x64xf32>
    %271 = arith.mulf %270, %226 : vector<16x64xf32>
    %cst_34 = arith.constant dense<0.000000e+00> : vector<64xf32>
    %272 = vector.multi_reduction <add>, %271, %cst_34 [0] : vector<16x64xf32> to vector<64xf32>
    %273 = vector.shape_cast %272 : vector<64xf32> to vector<1x64xf32>
    %274 = arith.mulf %103, %270 : vector<16x64xf32>
    %275 = arith.addf %274, %171 : vector<16x64xf32>
    %276 = arith.mulf %275, %233 : vector<16x64xf32>
    %cst_35 = arith.constant dense<0.000000e+00> : vector<64xf32>
    %277 = vector.multi_reduction <add>, %276, %cst_35 [0] : vector<16x64xf32> to vector<64xf32>
    %278 = vector.shape_cast %277 : vector<64xf32> to vector<1x64xf32>
    %279 = arith.mulf %107, %275 : vector<16x64xf32>
    %280 = arith.addf %279, %181 : vector<16x64xf32>
    %281 = arith.mulf %280, %240 : vector<16x64xf32>
    %cst_36 = arith.constant dense<0.000000e+00> : vector<64xf32>
    %282 = vector.multi_reduction <add>, %281, %cst_36 [0] : vector<16x64xf32> to vector<64xf32>
    %283 = vector.shape_cast %282 : vector<64xf32> to vector<1x64xf32>
    %284 = arith.mulf %111, %280 : vector<16x64xf32>
    %285 = arith.addf %284, %191 : vector<16x64xf32>
    %286 = arith.mulf %285, %247 : vector<16x64xf32>
    %cst_37 = arith.constant dense<0.000000e+00> : vector<64xf32>
    %287 = vector.multi_reduction <add>, %286, %cst_37 [0] : vector<16x64xf32> to vector<64xf32>
    %288 = vector.shape_cast %287 : vector<64xf32> to vector<1x64xf32>
    %289 = tpu.concatenate %253, %258, %263, %268, %273, %278, %283, %288 in 0 : vector<1x64xf32>, vector<1x64xf32>, vector<1x64xf32>, vector<1x64xf32>, vector<1x64xf32>, vector<1x64xf32>, vector<1x64xf32>, vector<1x64xf32> -> vector<8x64xf32>
    %290 = vector.broadcast %78 : vector<1x64xf32> to vector<8x64xf32>
    %291 = arith.mulf %59, %290 : vector<8x64xf32>
    %292 = arith.addf %289, %291 : vector<8x64xf32>
    %293 = math.absf %8 : vector<8x64xf32>
    %cst_38 = arith.constant 0.000000e+00 : f32
    %294 = vector.broadcast %cst_38 : f32 to vector<8x64xf32>
    %295 = arith.subf %294, %293 : vector<8x64xf32>
    %296 = math.exp %295 : vector<8x64xf32>
    %cst_39 = arith.constant 0.000000e+00 : f32
    %297 = vector.broadcast %cst_39 : f32 to vector<8x64xf32>
    %298 = arith.cmpf oge, %8, %297 : vector<8x64xf32>
    %cst_40 = arith.constant 1.000000e+00 : f32
    %299 = vector.broadcast %cst_40 : f32 to vector<8x64xf32>
    %300 = arith.addf %299, %296 : vector<8x64xf32>
    %cst_41 = arith.constant 1.000000e+00 : f32
    %301 = vector.broadcast %cst_41 : f32 to vector<8x64xf32>
    %302 = arith.divf %301, %300 : vector<8x64xf32>
    %cst_42 = arith.constant 1.000000e+00 : f32
    %303 = vector.broadcast %cst_42 : f32 to vector<8x64xf32>
    %304 = arith.addf %303, %296 : vector<8x64xf32>
    %305 = arith.divf %296, %304 : vector<8x64xf32>
    %306 = arith.select %298, %302, %305 : vector<8x64xi1>, vector<8x64xf32>
    %307 = arith.mulf %8, %306 : vector<8x64xf32>
    %308 = arith.mulf %292, %307 : vector<8x64xf32>
    %c160 = arith.constant 160 : index
    %c0_43 = arith.constant 0 : index
    %309 = vector.load %arg1[%c160, %c0_43] : memref<248x128xf32, #tpu.memory_space<vmem>>, vector<64x128xf32>
    %cst_44 = arith.constant dense<0.000000e+00> : vector<8x128xf32>
    %310 = tpu.matmul %308, %309, %cst_44 {dimension_numbers = #tpu.dot_dimension_numbers<[1], [0], [0], [1], [0, 0, 1, 1], [], []>} : vector<8x64xf32>, vector<64x128xf32>, vector<8x128xf32> -> vector<8x128xf32>
    %c0_45 = arith.constant 0 : index
    %c0_46 = arith.constant 0 : index
    %311 = vector.load %arg2[%c0_45, %c0_46] : memref<8x128xf32, #tpu.memory_space<vmem>>, vector<8x128xf32>
    tpu.vector_store %arg2[%c0_45, %c0_46], %310 {strides = array<i32>} : memref<8x128xf32, #tpu.memory_space<vmem>>, vector<8x128xf32>,
    return
  }
}

</mosaic_0001>

<llo_original>
// kernel: fwd.1
$region0: #{fwd.1}
  #allocation0 [shape = 'u32[]', space=smem, size = 0x4, offset = 0x4, fixed_abs, tag = 'smem constant byte address 0x4 - core index']
  #allocation1 [shape = 'u32[144,128]{1,0:T(1,128)}', space=vmem, size = 0x12000, scoped, tag = 'internal scratch']
  %s0 = inlined_call_operand.hbm [shape: f32[2,8,16], index: 0, kind: input, shape index: {}]
  %s1 = inlined_call_operand.hbm [shape: f32[248,128], index: 1, kind: input, shape index: {}]
  %s2 = inlined_call_operand.vmem [shape: f32[8,128], index: 2, kind: output, shape index: {}]
  %s3 = sld [smem:[#allocation0]]
  $region26: #{fwd.1} parent=0
    _
  %s5 = ssub.s32 1, %s3
  %s6 = scalar_select 0, %s5, %s3
  $region1: #{fwd.1} parent=0
    #allocation2 [shape = 'u8[8192]{0}', space=vmem, size = 0x2000, scoped, tag = 'input window, operand 0, single buffered']
    #allocation3 [shape = 's32[1]{0}', space=sflag, size = 0x4, scoped, tag = 'scoped memory for fwd.1']
    #allocation4 [shape = 'u8[126976]{0}', space=vmem, size = 0x1f000, scoped, tag = 'input window, operand 1, single buffered']
    #allocation5 [shape = 's32[1]{0}', space=sflag, size = 0x4, scoped, tag = 'scoped memory for fwd.1']
    %7 = vsyncpa [#allocation3], 0
    %8 = vsyncpa [#allocation5], 0
    // Predicated region
    $region2: #{fwd.1} parent=1 // pred_check
      _
    $region3: #{fwd.1} parent=1 // pred_check_branch
      %10 = sbr.rel (0) target = $region5
    $region4: #{fwd.1} parent=1 // pred_region
      %s12 = ssub.s32 256, 256
      %13 = vsyncadd [#allocation3], %s12
      %s14 = sshll.u32 [#allocation2], 4
      %s15 = int_to_ptr.vmem [resolvable:$true] %s14
      %20 = dma.hbm_to_vmem [thread:$0]  %s0, 256, %s15, [#allocation3], 128, 128, 8
    $region5: #{fwd.1} parent=1 // pred_fallthru
      _
    // Predicated region
    $region6: #{fwd.1} parent=1 // pred_check
      _
    $region7: #{fwd.1} parent=1 // pred_check_branch
      %22 = sbr.rel (0) target = $region9
    $region8: #{fwd.1} parent=1 // pred_region
      %s24 = ssub.s32 3968, 3968
      %25 = vsyncadd [#allocation5], %s24
      %s26 = sshll.u32 [#allocation4], 4
      %s27 = int_to_ptr.vmem [resolvable:$true] %s26
      %32 = dma.hbm_to_vmem [thread:$0]  %s1, 3968, %s27, [#allocation5], 128, 128, 8
    $region9: #{fwd.1} parent=1 // pred_fallthru
      _
    // Predicated region
    $region10: #{fwd.1} parent=1 // pred_check
      _
    $region11: #{fwd.1} parent=1 // pred_check_branch
      %34 = sbr.rel (0) target = $region13
    $region12: #{fwd.1} parent=1 // pred_region
      %35 = dma.done [#allocation3], 256
    $region13: #{fwd.1} parent=1 // pred_fallthru
      _
    // Predicated region
    $region14: #{fwd.1} parent=1 // pred_check
      _
    $region15: #{fwd.1} parent=1 // pred_check_branch
      %37 = sbr.rel (0) target = $region17
    $region16: #{fwd.1} parent=1 // pred_region
      %38 = dma.done [#allocation5], 3968
    $region17: #{fwd.1} parent=1 // pred_fallthru
      _
    %v39 = vld [vmem:[#allocation2] sm:$0xff]
    %s40 = scalar_lea.vmem [#allocation2], 8
    %v41 = vld [vmem:[%s40] sm:$0xff]
    %43 = vrot.lane.b32.xlu0 %v41, 16
    %v44 = vpop.permute.xlu0 %43
    %vm46 = vcmask 130048
    %v47 = vsel %vm46, %v39, %v44
    %v48 = vld [vmem:[#allocation4] sm:$0xff]
    %v49 = vld [vmem:[#allocation4 + $0x8] sm:$0xff]
    %v50 = vld [vmem:[#allocation4 + $0x10] sm:$0xff]
    %v51 = vld [vmem:[#allocation4 + $0x18] sm:$0xff]
    %vm52 = vcmask 261120
    %v54 = vsel %vm52, %v47, 0
    %56 = vmatprep.subr.mxu0 0.0
    %57 = vmatpush1.msra.mxu0 %v48
    %58 = vmatprep.subr.mxu0 0.0
    %59 = vmatpush1.msra.mxu0 %v49
    %60 = vmatprep.subr.mxu0 0.0
    %61 = vmatpush1.msra.mxu0 %v50
    %62 = vmatprep.subr.mxu0 0.0
    %63 = vmatpush1.msra.mxu0 %v51
    %64 = vmatprep.subr.mxu0 0.0
    %65 = vmatpush1.msra.mxu0 0.0
    %66 = vmatprep.subr.mxu0 0.0
    %67 = vmatpush1.msra.mxu0 0.0
    %68 = vmatprep.subr.mxu0 0.0
    %69 = vmatpush1.msra.mxu0 0.0
    %70 = vmatprep.subr.mxu0 0.0
    %71 = vmatpush1.msra.mxu0 0.0
    %72 = vmatprep.subr.mxu0 0.0
    %73 = vmatpush1.msra.mxu0 0.0
    %74 = vmatprep.subr.mxu0 0.0
    %75 = vmatpush1.msra.mxu0 0.0
    %76 = vmatprep.subr.mxu0 0.0
    %77 = vmatpush1.msra.mxu0 0.0
    %78 = vmatprep.subr.mxu0 0.0
    %79 = vmatpush1.msra.mxu0 0.0
    %80 = vmatprep.subr.mxu0 0.0
    %81 = vmatpush1.msra.mxu0 0.0
    %82 = vmatprep.subr.mxu0 0.0
    %83 = vmatpush1.msra.mxu0 0.0
    %84 = vmatprep.subr.mxu0 0.0
    %85 = vmatpush1.msra.mxu0 0.0
    %86 = vmatprep.subr.mxu0 0.0
    %87 = vmatpush1.msra.mxu0 0.0
    %88 = vmatprep.subr.mxu0 0.0
    %89 = vmatpush1.msra.mxu0 0.0
    %90 = vmatprep.subr.mxu0 0.0
    %91 = vmatpush1.msra.mxu0 0.0
    %92 = vmatprep.subr.mxu0 0.0
    %93 = vmatpush1.msra.mxu0 0.0
    %94 = vmatprep.subr.mxu0 0.0
    %95 = vmatpush1.msra.mxu0 0.0
    %96 = vmatprep.subr.mxu0 0.0
    %97 = vmatpush1.msra.mxu0 0.0
    %98 = vmatprep.subr.mxu0 0.0
    %99 = vmatpush1.msra.mxu0 0.0
    %100 = vmatprep.subr.mxu0 0.0
    %101 = vmatpush1.msra.mxu0 0.0
    %102 = vmatprep.subr.mxu0 0.0
    %103 = vmatpush1.msra.mxu0 0.0
    %104 = vmatprep.subr.mxu0 0.0
    %105 = vmatpush1.msra.mxu0 0.0
    %106 = vmatprep.subr.mxu0 0.0
    %107 = vmatpush1.msra.mxu0 0.0
    %108 = vmatprep.subr.mxu0 0.0
    %109 = vmatpush1.msra.mxu0 0.0
    %110 = vmatprep.subr.mxu0 0.0
    %111 = vmatpush1.msra.mxu0 0.0
    %112 = vmatprep.subr.mxu0 0.0
    %113 = vmatpush1.msra.mxu0 0.0
    %114 = vmatprep.subr.mxu0 0.0
    %115 = vmatpush1.msra.mxu0 0.0
    %116 = vmatprep.subr.mxu0 0.0
    %117 = vmatpush1.msra.mxu0 0.0
    %118 = vmatprep.subr.mxu0 0.0
    %119 = vmatpush1.msra.mxu0 0.0
    %120 = vmatprep.mubr.f32.mxu0 0.0
    %121 = vmatmul.mubr.f32.gmra.mrb[0].mxu0 %v54
    %v122 = vpop.f32.mrb[0].mxu0
    %v123 = vadd.f32 0.0, %v122
    %v124 = vpop.f32.mrb[0].mxu0
    %125 = vdwg.mxu0
    %v126 = vld [vmem:[#allocation4 + $0xf0] sm:$0xf]
    %v127 = vld [vmem:[#allocation4 + $0xf4] sm:$0x1]
    %v128 = vlaneseq
    %v129 = vshrl.u32 %v128, 7
    %v130 = vlaneseq
    %v131 = vshrl.u32 %v130, 7
    %v132 = vsub.s32 0, %v131
    %v133 = vrot.slane %v127, %v132
    %vm134 = vcmp.ge.s32.totalorder %v129, 3
    %v135 = vrot.slane %v123, 5
    %v136 = vsel %vm134, %v135, 0.0
    %v137 = vlaneseq
    %v138 = vshrl.u32 %v137, 7
    %v139 = vsub.s32 0, %v138
    %v140 = vrot.slane %v126, %v139
    %v141 = vmul.f32 %v140, %v136
    %v142 = vadd.f32 %v133, %v141
    %vm143 = vcmp.ge.s32.totalorder %v129, 2
    %v144 = vrot.slane %v123, 6
    %v145 = vsel %vm143, %v144, 0.0
    %v146 = vlaneseq
    %v147 = vshrl.u32 %v146, 7
    %v148 = vsub.s32 1, %v147
    %v149 = vrot.slane %v126, %v148
    %v150 = vmul.f32 %v149, %v145
    %v151 = vadd.f32 %v142, %v150
    %vm152 = vcmp.ge.s32.totalorder %v129, 1
    %v153 = vrot.slane %v123, 7
    %v154 = vsel %vm152, %v153, 0.0
    %v155 = vlaneseq
    %v156 = vshrl.u32 %v155, 7
    %v157 = vsub.s32 2, %v156
    %v158 = vrot.slane %v126, %v157
    %v159 = vmul.f32 %v158, %v154
    %v160 = vadd.f32 %v151, %v159
    %v161 = vlaneseq
    %v162 = vshrl.u32 %v161, 7
    %v163 = vsub.s32 3, %v162
    %v164 = vrot.slane %v126, %v163
    %v165 = vmul.f32 %v164, %v123
    %v166 = vadd.f32 %v160, %v165
    %v167 = vand.u32 2147483647, %v166
    %v168 = vsub.f32 0.0, %v167
    %v169 = vmul.f32 %v168, 1.442695
    %v170 = vpow.pop %v169
    %vm171 = vcmp.ge.f32.partialorder %v166, 0.0
    %v172 = vadd.f32 %v170, 1.0
    %v173 = vrcp.pop %v172
    %v174 = vmul.f32 1.0, %v173
    %v175 = vmul.f32 %v170, %v173
    %v176 = vsel %vm171, %v174, %v175
    %v177 = vmul.f32 %v166, %v176
    %v178 = vld [vmem:[#allocation4 + $0xf5] sm:$0x1]
    %v179 = vld [vmem:[#allocation4 + $0x20] sm:$0xff]
    %v180 = vld [vmem:[#allocation4 + $0x28] sm:$0xff]
    %v181 = vld [vmem:[#allocation4 + $0x30] sm:$0xff]
    %v182 = vld [vmem:[#allocation4 + $0x38] sm:$0xff]
    %v183 = vld [vmem:[#allocation4 + $0x40] sm:$0xff]
    %v184 = vld [vmem:[#allocation4 + $0x48] sm:$0xff]
    %v185 = vld [vmem:[#allocation4 + $0x50] sm:$0xff]
    %v186 = vld [vmem:[#allocation4 + $0x58] sm:$0xff]
    %v187 = vlaneseq
    %v188 = vshrl.u32 %v187, 7
    %v189 = vsub.s32 0, %v188
    %v190 = vrot.slane %v178, %v189
    %vm191 = vcmask 523264
    %v193 = vsel %vm191, %v177, 0
    %195 = vmatprep.subr.mxu0 0.0
    %196 = vmatpush1.msra.mxu0 %v179
    %197 = vmatprep.subr.mxu0 0.0
    %198 = vmatpush1.msra.mxu0 %v180
    %199 = vmatprep.subr.mxu0 0.0
    %200 = vmatpush1.msra.mxu0 %v181
    %201 = vmatprep.subr.mxu0 0.0
    %202 = vmatpush1.msra.mxu0 %v182
    %203 = vmatprep.subr.mxu0 0.0
    %204 = vmatpush1.msra.mxu0 %v183
    %205 = vmatprep.subr.mxu0 0.0
    %206 = vmatpush1.msra.mxu0 %v184
    %207 = vmatprep.subr.mxu0 0.0
    %208 = vmatpush1.msra.mxu0 %v185
    %209 = vmatprep.subr.mxu0 0.0
    %210 = vmatpush1.msra.mxu0 %v186
    %211 = vmatprep.subr.mxu0 0.0
    %212 = vmatpush1.msra.mxu0 0.0
    %213 = vmatprep.subr.mxu0 0.0
    %214 = vmatpush1.msra.mxu0 0.0
    %215 = vmatprep.subr.mxu0 0.0
    %216 = vmatpush1.msra.mxu0 0.0
    %217 = vmatprep.subr.mxu0 0.0
    %218 = vmatpush1.msra.mxu0 0.0
    %219 = vmatprep.subr.mxu0 0.0
    %220 = vmatpush1.msra.mxu0 0.0
    %221 = vmatprep.subr.mxu0 0.0
    %222 = vmatpush1.msra.mxu0 0.0
    %223 = vmatprep.subr.mxu0 0.0
    %224 = vmatpush1.msra.mxu0 0.0
    %225 = vmatprep.subr.mxu0 0.0
    %226 = vmatpush1.msra.mxu0 0.0
    %227 = vmatprep.subr.mxu0 0.0
    %228 = vmatpush1.msra.mxu0 0.0
    %229 = vmatprep.subr.mxu0 0.0
    %230 = vmatpush1.msra.mxu0 0.0
    %231 = vmatprep.subr.mxu0 0.0
    %232 = vmatpush1.msra.mxu0 0.0
    %233 = vmatprep.subr.mxu0 0.0
    %234 = vmatpush1.msra.mxu0 0.0
    %235 = vmatprep.subr.mxu0 0.0
    %236 = vmatpush1.msra.mxu0 0.0
    %237 = vmatprep.subr.mxu0 0.0
    %238 = vmatpush1.msra.mxu0 0.0
    %239 = vmatprep.subr.mxu0 0.0
    %240 = vmatpush1.msra.mxu0 0.0
    %241 = vmatprep.subr.mxu0 0.0
    %242 = vmatpush1.msra.mxu0 0.0
    %243 = vmatprep.subr.mxu0 0.0
    %244 = vmatpush1.msra.mxu0 0.0
    %245 = vmatprep.subr.mxu0 0.0
    %246 = vmatpush1.msra.mxu0 0.0
    %247 = vmatprep.subr.mxu0 0.0
    %248 = vmatpush1.msra.mxu0 0.0
    %249 = vmatprep.subr.mxu0 0.0
    %250 = vmatpush1.msra.mxu0 0.0
    %251 = vmatprep.subr.mxu0 0.0
    %252 = vmatpush1.msra.mxu0 0.0
    %253 = vmatprep.subr.mxu0 0.0
    %254 = vmatpush1.msra.mxu0 0.0
    %255 = vmatprep.subr.mxu0 0.0
    %256 = vmatpush1.msra.mxu0 0.0
    %257 = vmatprep.subr.mxu0 0.0
    %258 = vmatpush1.msra.mxu0 0.0
    %259 = vmatprep.mubr.f32.mxu0 0.0
    %260 = vmatmul.mubr.f32.gmra.mrb[0].mxu0 %v193
    %v261 = vpop.f32.mrb[0].mxu0
    %v262 = vadd.f32 %v190, %v261
    %v263 = vpop.f32.mrb[0].mxu0
    %264 = vdwg.mxu0
    %v265 = vmax.f32 %v262, 0.0
    %v266 = vand.u32 2147483647, %v262
    %v267 = vsub.f32 0.0, %v266
    %v268 = vmul.f32 %v267, 1.442695
    %v269 = vpow.pop %v268
    %v270 = vadd.f32 %v269, 1.0
    %v271 = vlog2.pop %v270
    %v272 = vmul.f32 %v271, 0.6931472
    %v273 = vadd.f32 %v265, %v272
    %v274 = vld [vmem:[#allocation4 + $0x60] sm:$0xff]
    %v275 = vld [vmem:[#allocation4 + $0x68] sm:$0xff]
    %v276 = vld [vmem:[#allocation4 + $0x70] sm:$0xff]
    %v277 = vld [vmem:[#allocation4 + $0x78] sm:$0xff]
    %v278 = vld [vmem:[#allocation4 + $0x80] sm:$0xff]
    %v279 = vld [vmem:[#allocation4 + $0x88] sm:$0xff]
    %v280 = vld [vmem:[#allocation4 + $0x90] sm:$0xff]
    %v281 = vld [vmem:[#allocation4 + $0x98] sm:$0xff]
    %v283 = vsel %vm191, %v274, 0
    %v286 = vsel %vm191, %v275, 0
    %v289 = vsel %vm191, %v276, 0
    %v292 = vsel %vm191, %v277, 0
    %v295 = vsel %vm191, %v278, 0
    %v298 = vsel %vm191, %v279, 0
    %v301 = vsel %vm191, %v280, 0
    %v304 = vsel %vm191, %v281, 0
    %306 = vmatprep.subr.mxu0 0.0
    %307 = vmatpush1.xpose.msra.mxu0 %v193
    %308 = vmatprep.subr.mxu0 0.0
    %309 = vmatpush1.xpose.msra.mxu0 0.0
    %310 = vmatprep.subr.mxu0 0.0
    %311 = vmatpush1.xpose.msra.mxu0 0.0
    %312 = vmatprep.subr.mxu0 0.0
    %313 = vmatpush1.xpose.msra.mxu0 0.0
    %314 = vmatprep.subr.mxu0 0.0
    %315 = vmatpush1.xpose.msra.mxu0 0.0
    %316 = vmatprep.subr.mxu0 0.0
    %317 = vmatpush1.xpose.msra.mxu0 0.0
    %318 = vmatprep.subr.mxu0 0.0
    %319 = vmatpush1.xpose.msra.mxu0 0.0
    %320 = vmatprep.subr.mxu0 0.0
    %321 = vmatpush1.xpose.msra.mxu0 0.0
    %322 = vmatprep.subr.mxu0 0.0
    %323 = vmatpush1.xpose.msra.mxu0 0.0
    %324 = vmatprep.subr.mxu0 0.0
    %325 = vmatpush1.xpose.msra.mxu0 0.0
    %326 = vmatprep.subr.mxu0 0.0
    %327 = vmatpush1.xpose.msra.mxu0 0.0
    %328 = vmatprep.subr.mxu0 0.0
    %329 = vmatpush1.xpose.msra.mxu0 0.0
    %330 = vmatprep.subr.mxu0 0.0
    %331 = vmatpush1.xpose.msra.mxu0 0.0
    %332 = vmatprep.subr.mxu0 0.0
    %333 = vmatpush1.xpose.msra.mxu0 0.0
    %334 = vmatprep.subr.mxu0 0.0
    %335 = vmatpush1.xpose.msra.mxu0 0.0
    %336 = vmatprep.subr.mxu0 0.0
    %337 = vmatpush1.xpose.msra.mxu0 0.0
    %338 = vmatprep.subr.mxu0 0.0
    %339 = vmatpush1.xpose.msra.mxu0 0.0
    %340 = vmatprep.subr.mxu0 0.0
    %341 = vmatpush1.xpose.msra.mxu0 0.0
    %342 = vmatprep.subr.mxu0 0.0
    %343 = vmatpush1.xpose.msra.mxu0 0.0
    %344 = vmatprep.subr.mxu0 0.0
    %345 = vmatpush1.xpose.msra.mxu0 0.0
    %346 = vmatprep.subr.mxu0 0.0
    %347 = vmatpush1.xpose.msra.mxu0 0.0
    %348 = vmatprep.subr.mxu0 0.0
    %349 = vmatpush1.xpose.msra.mxu0 0.0
    %350 = vmatprep.subr.mxu0 0.0
    %351 = vmatpush1.xpose.msra.mxu0 0.0
    %352 = vmatprep.subr.mxu0 0.0
    %353 = vmatpush1.xpose.msra.mxu0 0.0
    %354 = vmatprep.subr.mxu0 0.0
    %355 = vmatpush1.xpose.msra.mxu0 0.0
    %356 = vmatprep.subr.mxu0 0.0
    %357 = vmatpush1.xpose.msra.mxu0 0.0
    %358 = vmatprep.subr.mxu0 0.0
    %359 = vmatpush1.xpose.msra.mxu0 0.0
    %360 = vmatprep.subr.mxu0 0.0
    %361 = vmatpush1.xpose.msra.mxu0 0.0
    %362 = vmatprep.subr.mxu0 0.0
    %363 = vmatpush1.xpose.msra.mxu0 0.0
    %364 = vmatprep.subr.mxu0 0.0
    %365 = vmatpush1.xpose.msra.mxu0 0.0
    %366 = vmatprep.subr.mxu0 0.0
    %367 = vmatpush1.xpose.msra.mxu0 0.0
    %368 = vmatprep.subr.mxu0 0.0
    %369 = vmatpush1.xpose.msra.mxu0 0.0
    %370 = vmatprep.mubr.f32.mxu0 0.0
    %371 = vmatmul.mubr.f32.gmra.mrb[0].mxu0 %v283
    %v372 = vpop.f32.mrb[0].mxu0
    %v373 = vadd.f32 0.0, %v372
    %v374 = vpop.f32.mrb[0].mxu0
    %375 = vmatprep.mubr.f32.mxu0 0.0
    %376 = vmatmul.mubr.f32.gmra.mrb[0].mxu0 %v286
    %v377 = vpop.f32.mrb[0].mxu0
    %v378 = vadd.f32 0.0, %v377
    %v379 = vpop.f32.mrb[0].mxu0
    %380 = vmatprep.mubr.f32.mxu0 0.0
    %381 = vmatmul.mubr.f32.gmra.mrb[0].mxu0 %v289
    %v382 = vpop.f32.mrb[0].mxu0
    %v383 = vadd.f32 0.0, %v382
    %v384 = vpop.f32.mrb[0].mxu0
    %385 = vmatprep.mubr.f32.mxu0 0.0
    %386 = vmatmul.mubr.f32.gmra.mrb[0].mxu0 %v292
    %v387 = vpop.f32.mrb[0].mxu0
    %v388 = vadd.f32 0.0, %v387
    %v389 = vpop.f32.mrb[0].mxu0
    %390 = vmatprep.mubr.f32.mxu0 0.0
    %391 = vmatmul.mubr.f32.gmra.mrb[0].mxu0 %v295
    %v392 = vpop.f32.mrb[0].mxu0
    %v393 = vadd.f32 0.0, %v392
    %v394 = vpop.f32.mrb[0].mxu0
    %395 = vmatprep.mubr.f32.mxu0 0.0
    %396 = vmatmul.mubr.f32.gmra.mrb[0].mxu0 %v298
    %v397 = vpop.f32.mrb[0].mxu0
    %v398 = vadd.f32 0.0, %v397
    %v399 = vpop.f32.mrb[0].mxu0
    %400 = vmatprep.mubr.f32.mxu0 0.0
    %401 = vmatmul.mubr.f32.gmra.mrb[0].mxu0 %v301
    %v402 = vpop.f32.mrb[0].mxu0
    %v403 = vadd.f32 0.0, %v402
    %v404 = vpop.f32.mrb[0].mxu0
    %405 = vmatprep.mubr.f32.mxu0 0.0
    %406 = vmatmul.mubr.f32.gmra.mrb[0].mxu0 %v304
    %v407 = vpop.f32.mrb[0].mxu0
    %v408 = vadd.f32 0.0, %v407
    %v409 = vpop.f32.mrb[0].mxu0
    %410 = vdwg.mxu0
    %v411 = vld [vmem:[#allocation4 + $0xe0] sm:$0xff]
    %v412 = vld [vmem:[#allocation4 + $0xe8] sm:$0xff]
    %v413 = vld [vmem:[#allocation4 + $0xf6] sm:$0x1]
    %v414 = vmul.f32 %v273, %v177
    %v415 = vlaneseq
    %v416 = vshrl.u32 %v415, 7
    %v417 = vsub.s32 0, %v416
    %v418 = vrot.slane %v273, %v417
    %v419 = vmul.f32 %v418, %v411
    %v420 = vmul.f32 %v418, %v412
    %v421 = vmul.f32 %v419, 1.442695
    %v422 = vpow.pop %v421
    %v423 = vmul.f32 %v420, 1.442695
    %v424 = vpow.pop %v423
    %v425 = vlaneseq
    %v426 = vshrl.u32 %v425, 7
    %v427 = vsub.s32 1, %v426
    %v428 = vrot.slane %v273, %v427
    %v429 = vmul.f32 %v428, %v411
    %v430 = vmul.f32 %v428, %v412
    %v431 = vmul.f32 %v429, 1.442695
    %v432 = vpow.pop %v431
    %v433 = vmul.f32 %v430, 1.442695
    %v434 = vpow.pop %v433
    %v435 = vlaneseq
    %v436 = vshrl.u32 %v435, 7
    %v437 = vsub.s32 2, %v436
    %v438 = vrot.slane %v273, %v437
    %v439 = vmul.f32 %v438, %v411
    %v440 = vmul.f32 %v438, %v412
    %v441 = vmul.f32 %v439, 1.442695
    %v442 = vpow.pop %v441
    %v443 = vmul.f32 %v440, 1.442695
    %v444 = vpow.pop %v443
    %v445 = vlaneseq
    %v446 = vshrl.u32 %v445, 7
    %v447 = vsub.s32 3, %v446
    %v448 = vrot.slane %v273, %v447
    %v449 = vmul.f32 %v448, %v411
    %v450 = vmul.f32 %v448, %v412
    %v451 = vmul.f32 %v449, 1.442695
    %v452 = vpow.pop %v451
    %v453 = vmul.f32 %v450, 1.442695
    %v454 = vpow.pop %v453
    %v455 = vlaneseq
    %v456 = vshrl.u32 %v455, 7
    %v457 = vsub.s32 4, %v456
    %v458 = vrot.slane %v273, %v457
    %v459 = vmul.f32 %v458, %v411
    %v460 = vmul.f32 %v458, %v412
    %v461 = vmul.f32 %v459, 1.442695
    %v462 = vpow.pop %v461
    %v463 = vmul.f32 %v460, 1.442695
    %v464 = vpow.pop %v463
    %v465 = vlaneseq
    %v466 = vshrl.u32 %v465, 7
    %v467 = vsub.s32 5, %v466
    %v468 = vrot.slane %v273, %v467
    %v469 = vmul.f32 %v468, %v411
    %v470 = vmul.f32 %v468, %v412
    %v471 = vmul.f32 %v469, 1.442695
    %v472 = vpow.pop %v471
    %v473 = vmul.f32 %v470, 1.442695
    %v474 = vpow.pop %v473
    %v475 = vlaneseq
    %v476 = vshrl.u32 %v475, 7
    %v477 = vsub.s32 6, %v476
    %v478 = vrot.slane %v273, %v477
    %v479 = vmul.f32 %v478, %v411
    %v480 = vmul.f32 %v478, %v412
    %v481 = vmul.f32 %v479, 1.442695
    %v482 = vpow.pop %v481
    %v483 = vmul.f32 %v480, 1.442695
    %v484 = vpow.pop %v483
    %v485 = vlaneseq
    %v486 = vshrl.u32 %v485, 7
    %v487 = vsub.s32 7, %v486
    %v488 = vrot.slane %v273, %v487
    %v489 = vmul.f32 %v488, %v411
    %v490 = vmul.f32 %v488, %v412
    %v491 = vmul.f32 %v489, 1.442695
    %v492 = vpow.pop %v491
    %v493 = vmul.f32 %v490, 1.442695
    %v494 = vpow.pop %v493
    %496 = vset.pattern.permute.xlu0 0
    %497 = vperm.xlu0 %496, %v373
    %v498 = vpop.permute.xlu0 %497
    %501 = vset.pattern.permute.xlu0 0
    %502 = vperm.xlu0 %501, %v378
    %v503 = vpop.permute.xlu0 %502
    %506 = vset.pattern.permute.xlu0 0
    %507 = vperm.xlu0 %506, %v393
    %v508 = vpop.permute.xlu0 %507
    %511 = vset.pattern.permute.xlu0 0
    %512 = vperm.xlu0 %511, %v398
    %v513 = vpop.permute.xlu0 %512
    %v515 = vsel %vm52, %v498, %v508
    %v516 = vsel %vm52, %v503, %v513
    %v517 = vlaneseq
    %v518 = vshrl.u32 %v517, 7
    %v519 = vsub.s32 0, %v518
    %v520 = vrot.slane %v414, %v519
    %v521 = vmul.f32 %v520, %v515
    %v522 = vmul.f32 %v520, %v516
    %523 = vset.pattern.permute.xlu0 1
    %524 = vperm.xlu0 %523, %v373
    %v525 = vpop.permute.xlu0 %524
    %527 = vset.pattern.permute.xlu0 1
    %528 = vperm.xlu0 %527, %v378
    %v529 = vpop.permute.xlu0 %528
    %531 = vset.pattern.permute.xlu0 1
    %532 = vperm.xlu0 %531, %v393
    %v533 = vpop.permute.xlu0 %532
    %535 = vset.pattern.permute.xlu0 1
    %536 = vperm.xlu0 %535, %v398
    %v537 = vpop.permute.xlu0 %536
    %v539 = vsel %vm52, %v525, %v533
    %v540 = vsel %vm52, %v529, %v537
    %v541 = vlaneseq
    %v542 = vshrl.u32 %v541, 7
    %v543 = vsub.s32 1, %v542
    %v544 = vrot.slane %v414, %v543
    %v545 = vmul.f32 %v544, %v539
    %v546 = vmul.f32 %v544, %v540
    %547 = vset.pattern.permute.xlu0 2
    %548 = vperm.xlu0 %547, %v373
    %v549 = vpop.permute.xlu0 %548
    %551 = vset.pattern.permute.xlu0 2
    %552 = vperm.xlu0 %551, %v378
    %v553 = vpop.permute.xlu0 %552
    %555 = vset.pattern.permute.xlu0 2
    %556 = vperm.xlu0 %555, %v393
    %v557 = vpop.permute.xlu0 %556
    %559 = vset.pattern.permute.xlu0 2
    %560 = vperm.xlu0 %559, %v398
    %v561 = vpop.permute.xlu0 %560
    %v563 = vsel %vm52, %v549, %v557
    %v564 = vsel %vm52, %v553, %v561
    %v565 = vlaneseq
    %v566 = vshrl.u32 %v565, 7
    %v567 = vsub.s32 2, %v566
    %v568 = vrot.slane %v414, %v567
    %v569 = vmul.f32 %v568, %v563
    %v570 = vmul.f32 %v568, %v564
    %571 = vset.pattern.permute.xlu0 3
    %572 = vperm.xlu0 %571, %v373
    %v573 = vpop.permute.xlu0 %572
    %575 = vset.pattern.permute.xlu0 3
    %576 = vperm.xlu0 %575, %v378
    %v577 = vpop.permute.xlu0 %576
    %579 = vset.pattern.permute.xlu0 3
    %580 = vperm.xlu0 %579, %v393
    %v581 = vpop.permute.xlu0 %580
    %583 = vset.pattern.permute.xlu0 3
    %584 = vperm.xlu0 %583, %v398
    %v585 = vpop.permute.xlu0 %584
    %v587 = vsel %vm52, %v573, %v581
    %v588 = vsel %vm52, %v577, %v585
    %v589 = vlaneseq
    %v590 = vshrl.u32 %v589, 7
    %v591 = vsub.s32 3, %v590
    %v592 = vrot.slane %v414, %v591
    %v593 = vmul.f32 %v592, %v587
    %v594 = vmul.f32 %v592, %v588
    %595 = vset.pattern.permute.xlu0 4
    %596 = vperm.xlu0 %595, %v373
    %v597 = vpop.permute.xlu0 %596
    %599 = vset.pattern.permute.xlu0 4
    %600 = vperm.xlu0 %599, %v378
    %v601 = vpop.permute.xlu0 %600
    %603 = vset.pattern.permute.xlu0 4
    %604 = vperm.xlu0 %603, %v393
    %v605 = vpop.permute.xlu0 %604
    %607 = vset.pattern.permute.xlu0 4
    %608 = vperm.xlu0 %607, %v398
    %v609 = vpop.permute.xlu0 %608
    %v611 = vsel %vm52, %v597, %v605
    %v612 = vsel %vm52, %v601, %v609
    %v613 = vlaneseq
    %v614 = vshrl.u32 %v613, 7
    %v615 = vsub.s32 4, %v614
    %v616 = vrot.slane %v414, %v615
    %v617 = vmul.f32 %v616, %v611
    %v618 = vmul.f32 %v616, %v612
    %619 = vset.pattern.permute.xlu0 5
    %620 = vperm.xlu0 %619, %v373
    %v621 = vpop.permute.xlu0 %620
    %623 = vset.pattern.permute.xlu0 5
    %624 = vperm.xlu0 %623, %v378
    %v625 = vpop.permute.xlu0 %624
    %627 = vset.pattern.permute.xlu0 5
    %628 = vperm.xlu0 %627, %v393
    %v629 = vpop.permute.xlu0 %628
    %631 = vset.pattern.permute.xlu0 5
    %632 = vperm.xlu0 %631, %v398
    %v633 = vpop.permute.xlu0 %632
    %v635 = vsel %vm52, %v621, %v629
    %v636 = vsel %vm52, %v625, %v633
    %v637 = vlaneseq
    %v638 = vshrl.u32 %v637, 7
    %v639 = vsub.s32 5, %v638
    %v640 = vrot.slane %v414, %v639
    %v641 = vmul.f32 %v640, %v635
    %v642 = vmul.f32 %v640, %v636
    %643 = vset.pattern.permute.xlu0 6
    %644 = vperm.xlu0 %643, %v373
    %v645 = vpop.permute.xlu0 %644
    %647 = vset.pattern.permute.xlu0 6
    %648 = vperm.xlu0 %647, %v378
    %v649 = vpop.permute.xlu0 %648
    %651 = vset.pattern.permute.xlu0 6
    %652 = vperm.xlu0 %651, %v393
    %v653 = vpop.permute.xlu0 %652
    %655 = vset.pattern.permute.xlu0 6
    %656 = vperm.xlu0 %655, %v398
    %v657 = vpop.permute.xlu0 %656
    %v659 = vsel %vm52, %v645, %v653
    %v660 = vsel %vm52, %v649, %v657
    %v661 = vlaneseq
    %v662 = vshrl.u32 %v661, 7
    %v663 = vsub.s32 6, %v662
    %v664 = vrot.slane %v414, %v663
    %v665 = vmul.f32 %v664, %v659
    %v666 = vmul.f32 %v664, %v660
    %667 = vset.pattern.permute.xlu0 7
    %668 = vperm.xlu0 %667, %v373
    %v669 = vpop.permute.xlu0 %668
    %671 = vset.pattern.permute.xlu0 7
    %672 = vperm.xlu0 %671, %v378
    %v673 = vpop.permute.xlu0 %672
    %675 = vset.pattern.permute.xlu0 7
    %676 = vperm.xlu0 %675, %v393
    %v677 = vpop.permute.xlu0 %676
    %679 = vset.pattern.permute.xlu0 7
    %680 = vperm.xlu0 %679, %v398
    %v681 = vpop.permute.xlu0 %680
    %v683 = vsel %vm52, %v669, %v677
    %v684 = vsel %vm52, %v673, %v681
    %v685 = vlaneseq
    %v686 = vshrl.u32 %v685, 7
    %v687 = vsub.s32 7, %v686
    %v688 = vrot.slane %v414, %v687
    %v689 = vmul.f32 %v688, %v683
    %v690 = vmul.f32 %v688, %v684
    %692 = vset.pattern.permute.xlu0 0
    %693 = vperm.xlu0 %692, %v383
    %v694 = vpop.permute.xlu0 %693
    %697 = vset.pattern.permute.xlu0 0
    %698 = vperm.xlu0 %697, %v388
    %v699 = vpop.permute.xlu0 %698
    %702 = vset.pattern.permute.xlu0 0
    %703 = vperm.xlu0 %702, %v403
    %v704 = vpop.permute.xlu0 %703
    %707 = vset.pattern.permute.xlu0 0
    %708 = vperm.xlu0 %707, %v408
    %v709 = vpop.permute.xlu0 %708
    %v711 = vsel %vm52, %v694, %v704
    %v712 = vsel %vm52, %v699, %v709
    %713 = vset.pattern.permute.xlu0 1
    %714 = vperm.xlu0 %713, %v383
    %v715 = vpop.permute.xlu0 %714
    %717 = vset.pattern.permute.xlu0 1
    %718 = vperm.xlu0 %717, %v388
    %v719 = vpop.permute.xlu0 %718
    %721 = vset.pattern.permute.xlu0 1
    %722 = vperm.xlu0 %721, %v403
    %v723 = vpop.permute.xlu0 %722
    %725 = vset.pattern.permute.xlu0 1
    %726 = vperm.xlu0 %725, %v408
    %v727 = vpop.permute.xlu0 %726
    %v729 = vsel %vm52, %v715, %v723
    %v730 = vsel %vm52, %v719, %v727
    %731 = vset.pattern.permute.xlu0 2
    %732 = vperm.xlu0 %731, %v383
    %v733 = vpop.permute.xlu0 %732
    %735 = vset.pattern.permute.xlu0 2
    %736 = vperm.xlu0 %735, %v388
    %v737 = vpop.permute.xlu0 %736
    %739 = vset.pattern.permute.xlu0 2
    %740 = vperm.xlu0 %739, %v403
    %v741 = vpop.permute.xlu0 %740
    %743 = vset.pattern.permute.xlu0 2
    %744 = vperm.xlu0 %743, %v408
    %v745 = vpop.permute.xlu0 %744
    %v747 = vsel %vm52, %v733, %v741
    %v748 = vsel %vm52, %v737, %v745
    %749 = vset.pattern.permute.xlu0 3
    %750 = vperm.xlu0 %749, %v383
    %v751 = vpop.permute.xlu0 %750
    %753 = vset.pattern.permute.xlu0 3
    %754 = vperm.xlu0 %753, %v388
    %v755 = vpop.permute.xlu0 %754
    %757 = vset.pattern.permute.xlu0 3
    %758 = vperm.xlu0 %757, %v403
    %v759 = vpop.permute.xlu0 %758
    %761 = vset.pattern.permute.xlu0 3
    %762 = vperm.xlu0 %761, %v408
    %v763 = vpop.permute.xlu0 %762
    %v765 = vsel %vm52, %v751, %v759
    %v766 = vsel %vm52, %v755, %v763
    %767 = vset.pattern.permute.xlu0 4
    %768 = vperm.xlu0 %767, %v383
    %v769 = vpop.permute.xlu0 %768
    %771 = vset.pattern.permute.xlu0 4
    %772 = vperm.xlu0 %771, %v388
    %v773 = vpop.permute.xlu0 %772
    %775 = vset.pattern.permute.xlu0 4
    %776 = vperm.xlu0 %775, %v403
    %v777 = vpop.permute.xlu0 %776
    %779 = vset.pattern.permute.xlu0 4
    %780 = vperm.xlu0 %779, %v408
    %v781 = vpop.permute.xlu0 %780
    %v783 = vsel %vm52, %v769, %v777
    %v784 = vsel %vm52, %v773, %v781
    %785 = vset.pattern.permute.xlu0 5
    %786 = vperm.xlu0 %785, %v383
    %v787 = vpop.permute.xlu0 %786
    %789 = vset.pattern.permute.xlu0 5
    %790 = vperm.xlu0 %789, %v388
    %v791 = vpop.permute.xlu0 %790
    %793 = vset.pattern.permute.xlu0 5
    %794 = vperm.xlu0 %793, %v403
    %v795 = vpop.permute.xlu0 %794
    %797 = vset.pattern.permute.xlu0 5
    %798 = vperm.xlu0 %797, %v408
    %v799 = vpop.permute.xlu0 %798
    %v801 = vsel %vm52, %v787, %v795
    %v802 = vsel %vm52, %v791, %v799
    %803 = vset.pattern.permute.xlu0 6
    %804 = vperm.xlu0 %803, %v383
    %v805 = vpop.permute.xlu0 %804
    %807 = vset.pattern.permute.xlu0 6
    %808 = vperm.xlu0 %807, %v388
    %v809 = vpop.permute.xlu0 %808
    %811 = vset.pattern.permute.xlu0 6
    %812 = vperm.xlu0 %811, %v403
    %v813 = vpop.permute.xlu0 %812
    %815 = vset.pattern.permute.xlu0 6
    %816 = vperm.xlu0 %815, %v408
    %v817 = vpop.permute.xlu0 %816
    %v819 = vsel %vm52, %v805, %v813
    %v820 = vsel %vm52, %v809, %v817
    %821 = vset.pattern.permute.xlu0 7
    %822 = vperm.xlu0 %821, %v383
    %v823 = vpop.permute.xlu0 %822
    %825 = vset.pattern.permute.xlu0 7
    %826 = vperm.xlu0 %825, %v388
    %v827 = vpop.permute.xlu0 %826
    %829 = vset.pattern.permute.xlu0 7
    %830 = vperm.xlu0 %829, %v403
    %v831 = vpop.permute.xlu0 %830
    %833 = vset.pattern.permute.xlu0 7
    %834 = vperm.xlu0 %833, %v408
    %v835 = vpop.permute.xlu0 %834
    %v837 = vsel %vm52, %v823, %v831
    %v838 = vsel %vm52, %v827, %v835
    %v839 = vmul.f32 %v422, 0.0
    %v840 = vmul.f32 %v424, 0.0
    %v841 = vadd.f32 %v839, %v521
    %v842 = vadd.f32 %v840, %v522
    %v843 = vmul.f32 %v841, %v711
    %v844 = vmul.f32 %v842, %v712
    %v845 = vsel %vm191, %v843, 0.0
    %v846 = vsel %vm191, %v844, 0.0
    %v847 = vadd.f32 %v845, %v846
    %v848 = vrot.slane %v847, 4
    %v849 = vadd.f32 %v847, %v848
    %v850 = vrot.slane %v849, 2
    %v851 = vadd.f32 %v849, %v850
    %v852 = vrot.slane %v851, 1
    %v853 = vadd.f32 %v851, %v852
    %v854 = vmul.f32 %v432, %v841
    %v855 = vmul.f32 %v434, %v842
    %v856 = vadd.f32 %v854, %v545
    %v857 = vadd.f32 %v855, %v546
    %v858 = vmul.f32 %v856, %v729
    %v859 = vmul.f32 %v857, %v730
    %v860 = vsel %vm191, %v858, 0.0
    %v861 = vsel %vm191, %v859, 0.0
    %v862 = vadd.f32 %v860, %v861
    %v863 = vrot.slane %v862, 4
    %v864 = vadd.f32 %v862, %v863
    %v865 = vrot.slane %v864, 2
    %v866 = vadd.f32 %v864, %v865
    %v867 = vrot.slane %v866, 1
    %v868 = vadd.f32 %v866, %v867
    %v869 = vmul.f32 %v442, %v856
    %v870 = vmul.f32 %v444, %v857
    %v871 = vadd.f32 %v869, %v569
    %v872 = vadd.f32 %v870, %v570
    %v873 = vmul.f32 %v871, %v747
    %v874 = vmul.f32 %v872, %v748
    %v875 = vsel %vm191, %v873, 0.0
    %v876 = vsel %vm191, %v874, 0.0
    %v877 = vadd.f32 %v875, %v876
    %v878 = vrot.slane %v877, 4
    %v879 = vadd.f32 %v877, %v878
    %v880 = vrot.slane %v879, 2
    %v881 = vadd.f32 %v879, %v880
    %v882 = vrot.slane %v881, 1
    %v883 = vadd.f32 %v881, %v882
    %v884 = vmul.f32 %v452, %v871
    %v885 = vmul.f32 %v454, %v872
    %v886 = vadd.f32 %v884, %v593
    %v887 = vadd.f32 %v885, %v594
    %v888 = vmul.f32 %v886, %v765
    %v889 = vmul.f32 %v887, %v766
    %v890 = vsel %vm191, %v888, 0.0
    %v891 = vsel %vm191, %v889, 0.0
    %v892 = vadd.f32 %v890, %v891
    %v893 = vrot.slane %v892, 4
    %v894 = vadd.f32 %v892, %v893
    %v895 = vrot.slane %v894, 2
    %v896 = vadd.f32 %v894, %v895
    %v897 = vrot.slane %v896, 1
    %v898 = vadd.f32 %v896, %v897
    %v899 = vmul.f32 %v462, %v886
    %v900 = vmul.f32 %v464, %v887
    %v901 = vadd.f32 %v899, %v617
    %v902 = vadd.f32 %v900, %v618
    %v903 = vmul.f32 %v901, %v783
    %v904 = vmul.f32 %v902, %v784
    %v905 = vsel %vm191, %v903, 0.0
    %v906 = vsel %vm191, %v904, 0.0
    %v907 = vadd.f32 %v905, %v906
    %v908 = vrot.slane %v907, 4
    %v909 = vadd.f32 %v907, %v908
    %v910 = vrot.slane %v909, 2
    %v911 = vadd.f32 %v909, %v910
    %v912 = vrot.slane %v911, 1
    %v913 = vadd.f32 %v911, %v912
    %v914 = vmul.f32 %v472, %v901
    %v915 = vmul.f32 %v474, %v902
    %v916 = vadd.f32 %v914, %v641
    %v917 = vadd.f32 %v915, %v642
    %v918 = vmul.f32 %v916, %v801
    %v919 = vmul.f32 %v917, %v802
    %v920 = vsel %vm191, %v918, 0.0
    %v921 = vsel %vm191, %v919, 0.0
    %v922 = vadd.f32 %v920, %v921
    %v923 = vrot.slane %v922, 4
    %v924 = vadd.f32 %v922, %v923
    %v925 = vrot.slane %v924, 2
    %v926 = vadd.f32 %v924, %v925
    %v927 = vrot.slane %v926, 1
    %v928 = vadd.f32 %v926, %v927
    %v929 = vmul.f32 %v482, %v916
    %v930 = vmul.f32 %v484, %v917
    %v931 = vadd.f32 %v929, %v665
    %v932 = vadd.f32 %v930, %v666
    %v933 = vmul.f32 %v931, %v819
    %v934 = vmul.f32 %v932, %v820
    %v935 = vsel %vm191, %v933, 0.0
    %v936 = vsel %vm191, %v934, 0.0
    %v937 = vadd.f32 %v935, %v936
    %v938 = vrot.slane %v937, 4
    %v939 = vadd.f32 %v937, %v938
    %v940 = vrot.slane %v939, 2
    %v941 = vadd.f32 %v939, %v940
    %v942 = vrot.slane %v941, 1
    %v943 = vadd.f32 %v941, %v942
    %v944 = vmul.f32 %v492, %v931
    %v945 = vmul.f32 %v494, %v932
    %v946 = vadd.f32 %v944, %v689
    %v947 = vadd.f32 %v945, %v690
    %v948 = vmul.f32 %v946, %v837
    %v949 = vmul.f32 %v947, %v838
    %v950 = vsel %vm191, %v948, 0.0
    %v951 = vsel %vm191, %v949, 0.0
    %v952 = vadd.f32 %v950, %v951
    %v953 = vrot.slane %v952, 4
    %v954 = vadd.f32 %v952, %v953
    %v955 = vrot.slane %v954, 2
    %v956 = vadd.f32 %v954, %v955
    %v957 = vrot.slane %v956, 1
    %v958 = vadd.f32 %v956, %v957
    %vm959 = vcmask 1040384
    %v960 = vsel %vm959, %v853, %v868
    %vm961 = vcmask 1041408
    %v962 = vsel %vm961, %v960, %v883
    %vm963 = vcmask 1042432
    %v964 = vsel %vm963, %v962, %v898
    %vm965 = vcmask 1043456
    %v966 = vsel %vm965, %v964, %v913
    %vm967 = vcmask 1044480
    %v968 = vsel %vm967, %v966, %v928
    %vm969 = vcmask 1045504
    %v970 = vsel %vm969, %v968, %v943
    %vm971 = vcmask 1046528
    %v972 = vsel %vm971, %v970, %v958
    %v973 = vlaneseq
    %v974 = vshrl.u32 %v973, 7
    %v975 = vsub.s32 0, %v974
    %v976 = vrot.slane %v413, %v975
    %v977 = vmul.f32 %v177, %v976
    %v978 = vadd.f32 %v972, %v977
    %v979 = vand.u32 2147483647, %v123
    %v980 = vsub.f32 0.0, %v979
    %v981 = vmul.f32 %v980, 1.442695
    %v982 = vpow.pop %v981
    %vm983 = vcmp.ge.f32.partialorder %v123, 0.0
    %v984 = vadd.f32 %v982, 1.0
    %v985 = vrcp.pop %v984
    %v986 = vmul.f32 1.0, %v985
    %v987 = vmul.f32 %v982, %v985
    %v988 = vsel %vm983, %v986, %v987
    %v989 = vmul.f32 %v123, %v988
    %991 = vrot.lane.b32.xlu0 %v989, 64
    %v992 = vpop.permute.xlu0 %991
    %v994 = vmul.f32 %v978, %v992
    %v995 = vld [vmem:[#allocation4 + $0xa0] sm:$0xff]
    %v996 = vld [vmem:[#allocation4 + $0xa8] sm:$0xff]
    %v997 = vld [vmem:[#allocation4 + $0xb0] sm:$0xff]
    %v998 = vld [vmem:[#allocation4 + $0xb8] sm:$0xff]
    %v999 = vld [vmem:[#allocation4 + $0xc0] sm:$0xff]
    %v1000 = vld [vmem:[#allocation4 + $0xc8] sm:$0xff]
    %v1001 = vld [vmem:[#allocation4 + $0xd0] sm:$0xff]
    %v1002 = vld [vmem:[#allocation4 + $0xd8] sm:$0xff]
    %v1004 = vsel %vm191, %v994, 0
    %1006 = vmatprep.subr.mxu0 0.0
    %1007 = vmatpush1.msra.mxu0 %v995
    %1008 = vmatprep.subr.mxu0 0.0
    %1009 = vmatpush1.msra.mxu0 %v996
    %1010 = vmatprep.subr.mxu0 0.0
    %1011 = vmatpush1.msra.mxu0 %v997
    %1012 = vmatprep.subr.mxu0 0.0
    %1013 = vmatpush1.msra.mxu0 %v998
    %1014 = vmatprep.subr.mxu0 0.0
    %1015 = vmatpush1.msra.mxu0 %v999
    %1016 = vmatprep.subr.mxu0 0.0
    %1017 = vmatpush1.msra.mxu0 %v1000
    %1018 = vmatprep.subr.mxu0 0.0
    %1019 = vmatpush1.msra.mxu0 %v1001
    %1020 = vmatprep.subr.mxu0 0.0
    %1021 = vmatpush1.msra.mxu0 %v1002
    %1022 = vmatprep.subr.mxu0 0.0
    %1023 = vmatpush1.msra.mxu0 0.0
    %1024 = vmatprep.subr.mxu0 0.0
    %1025 = vmatpush1.msra.mxu0 0.0
    %1026 = vmatprep.subr.mxu0 0.0
    %1027 = vmatpush1.msra.mxu0 0.0
    %1028 = vmatprep.subr.mxu0 0.0
    %1029 = vmatpush1.msra.mxu0 0.0
    %1030 = vmatprep.subr.mxu0 0.0
    %1031 = vmatpush1.msra.mxu0 0.0
    %1032 = vmatprep.subr.mxu0 0.0
    %1033 = vmatpush1.msra.mxu0 0.0
    %1034 = vmatprep.subr.mxu0 0.0
    %1035 = vmatpush1.msra.mxu0 0.0
    %1036 = vmatprep.subr.mxu0 0.0
    %1037 = vmatpush1.msra.mxu0 0.0
    %1038 = vmatprep.subr.mxu0 0.0
    %1039 = vmatpush1.msra.mxu0 0.0
    %1040 = vmatprep.subr.mxu0 0.0
    %1041 = vmatpush1.msra.mxu0 0.0
    %1042 = vmatprep.subr.mxu0 0.0
    %1043 = vmatpush1.msra.mxu0 0.0
    %1044 = vmatprep.subr.mxu0 0.0
    %1045 = vmatpush1.msra.mxu0 0.0
    %1046 = vmatprep.subr.mxu0 0.0
    %1047 = vmatpush1.msra.mxu0 0.0
    %1048 = vmatprep.subr.mxu0 0.0
    %1049 = vmatpush1.msra.mxu0 0.0
    %1050 = vmatprep.subr.mxu0 0.0
    %1051 = vmatpush1.msra.mxu0 0.0
    %1052 = vmatprep.subr.mxu0 0.0
    %1053 = vmatpush1.msra.mxu0 0.0
    %1054 = vmatprep.subr.mxu0 0.0
    %1055 = vmatpush1.msra.mxu0 0.0
    %1056 = vmatprep.subr.mxu0 0.0
    %1057 = vmatpush1.msra.mxu0 0.0
    %1058 = vmatprep.subr.mxu0 0.0
    %1059 = vmatpush1.msra.mxu0 0.0
    %1060 = vmatprep.subr.mxu0 0.0
    %1061 = vmatpush1.msra.mxu0 0.0
    %1062 = vmatprep.subr.mxu0 0.0
    %1063 = vmatpush1.msra.mxu0 0.0
    %1064 = vmatprep.subr.mxu0 0.0
    %1065 = vmatpush1.msra.mxu0 0.0
    %1066 = vmatprep.subr.mxu0 0.0
    %1067 = vmatpush1.msra.mxu0 0.0
    %1068 = vmatprep.subr.mxu0 0.0
    %1069 = vmatpush1.msra.mxu0 0.0
    %1070 = vmatprep.mubr.f32.mxu0 0.0
    %1071 = vmatmul.mubr.f32.gmra.mrb[0].mxu0 %v1004
    %v1072 = vpop.f32.mrb[0].mxu0
    %v1073 = vadd.f32 0.0, %v1072
    %v1074 = vpop.f32.mrb[0].mxu0
    %1075 = vdwg.mxu0
    %1076 = vst [vmem:[%s2] sm:$0xff] %v1073
    // Predicated region
    $region18: #{fwd.1} parent=1 // pred_check
      _
    $region19: #{fwd.1} parent=1 // pred_check_branch
      %1078 = sbr.rel (0) target = $region21
    $region20: #{fwd.1} parent=1 // pred_region
      _
    $region21: #{fwd.1} parent=1 // pred_fallthru
      _
    // Predicated region
    $region22: #{fwd.1} parent=1 // pred_check
      _
    $region23: #{fwd.1} parent=1 // pred_check_branch
      %1080 = sbr.rel (0) target = $region25
    $region24: #{fwd.1} parent=1 // pred_region
      _
    $region25: #{fwd.1} parent=1 // pred_fallthru
      _
    %1081 = vsyncpa [#allocation3], 1
    %1082 = vsyncpa [#allocation5], 1

</llo_original>
